<compile_context>
chip_gen: v6e
topology: v6e:2x2x1
jax: 0.10.0
libtpu: 0.0.40
codegen_flags: <defaults>
</compile_context>

<pallas_src>
import functools

import jax
import jax.numpy as jnp
from jax.experimental import pallas as pl
from jax.experimental.pallas import tpu as pltpu


def mymodel_kernel(
    x_ref,
    # dense_layer_1: Linear(features,10), Linear(10,15)
    d1_wa, d1_ba, d1_wb, d1_bb,
    # fused [dense_layer_2.lin0 | activated_state_1.lin0]  (15, 20) — both eat extras_1
    f1_w, f1_b,
    # dense_layer_2 second linear: Linear(10,15)
    d2_wb, d2_bb,
    # fused [ffn_layer | activated_state_2.lin0]  (15, predictions+10) — both eat extras_2
    f2_w, f2_b,
    # activated_state_1 second linear: Linear(10,state_1)
    s1_wb, s1_bb,
    # activated_state_2 second linear: Linear(10,state_2)
    s2_wb, s2_bb,
    # single output slab (TB, state_1 + state_2 + predictions)
    out_ref,
    *, predictions,
):
    f32 = jnp.float32
    bf16 = jnp.bfloat16

    x = x_ref[...].astype(bf16)

    # --- dense_layer_1: Linear -> ReLU -> Linear -> ReLU -----------------------
    h = jnp.dot(x, d1_wa[...], preferred_element_type=f32) + d1_ba[...]
    h = jnp.maximum(h, 0.0).astype(bf16)
    extras_1 = jnp.dot(h, d1_wb[...], preferred_element_type=f32) + d1_bb[...]
    extras_1 = jnp.maximum(extras_1, 0.0).astype(bf16)

    # --- fused first linears of dense_layer_2 / activated_state_1 (one matmul) -
    z1 = jnp.dot(extras_1, f1_w[...], preferred_element_type=f32) + f1_b[...]
    z1 = jnp.maximum(z1, 0.0).astype(bf16)         # both halves are ReLU'd
    h_d2 = z1[:, :10]                              # dense_layer_2 hidden
    h_s1 = z1[:, 10:]                              # activated_state_1 hidden

    # --- dense_layer_2 second linear + ReLU -> extras_2 ------------------------
    extras_2 = jnp.dot(h_d2, d2_wb[...], preferred_element_type=f32) + d2_bb[...]
    extras_2 = jnp.maximum(extras_2, 0.0).astype(bf16)

    # --- fused ffn_layer (no ReLU) / activated_state_2 first linear (ReLU) -----
    z2 = jnp.dot(extras_2, f2_w[...], preferred_element_type=f32) + f2_b[...]
    pred = z2[:, :predictions]                     # predicted_out: no activation
    h_s2 = jnp.maximum(z2[:, predictions:], 0.0).astype(bf16)

    # --- second linears of activated_state_{1,2} + ReLU ------------------------
    out_1 = jnp.maximum(
        jnp.dot(h_s1, s1_wb[...], preferred_element_type=f32) + s1_bb[...], 0.0)
    out_2 = jnp.maximum(
        jnp.dot(h_s2, s2_wb[...], preferred_element_type=f32) + s2_bb[...], 0.0)

    # one lane-concatenated store per tile (single output DMA stream)
    out_ref[...] = jnp.concatenate([out_1, out_2, pred], axis=-1)


def _linear_params(key, in_dim, out_dim):
    """PyTorch-default-style init; weight returned already transposed to (in, out)."""
    kw, kb = jax.random.split(key)
    bound = 1.0 / jnp.sqrt(jnp.float32(in_dim))
    w = jax.random.uniform(kw, (in_dim, out_dim), jnp.float32, -bound, bound)
    b = jax.random.uniform(kb, (1, out_dim), jnp.float32, -bound, bound)
    return w, b


def make_raw_params(features, state_1, state_2, predictions, seed=0):
    key = jax.random.PRNGKey(seed)
    keys = jax.random.split(key, 9)
    return dict(
        d1_lin0=_linear_params(keys[0], features, 10),
        d1_lin1=_linear_params(keys[1], 10, 15),
        d2_lin0=_linear_params(keys[2], 15, 10),
        d2_lin1=_linear_params(keys[3], 10, 15),
        ffn=_linear_params(keys[4], 15, predictions),
        s1_lin0=_linear_params(keys[5], 15, 10),
        s1_lin1=_linear_params(keys[6], 10, state_1),
        s2_lin0=_linear_params(keys[7], 15, 10),
        s2_lin1=_linear_params(keys[8], 10, state_2),
    )


def fuse_params(raw):
    """Host-side weight fusion + bf16 cast for the kernel.

    Weights feeding the same activation are concatenated along the output dim so
    the kernel runs one wider matmul instead of two narrow ones.  Weights go to
    bf16 (MXU native); biases stay f32 and are added to the f32 accumulator.
    """
    bf16 = jnp.bfloat16
    d1_wa, d1_ba = raw["d1_lin0"]
    d1_wb, d1_bb = raw["d1_lin1"]
    d2_wa, d2_ba = raw["d2_lin0"]
    d2_wb, d2_bb = raw["d2_lin1"]
    ffn_w, ffn_b = raw["ffn"]
    s1_wa, s1_ba = raw["s1_lin0"]
    s1_wb, s1_bb = raw["s1_lin1"]
    s2_wa, s2_ba = raw["s2_lin0"]
    s2_wb, s2_bb = raw["s2_lin1"]

    f1_w = jnp.concatenate([d2_wa, s1_wa], axis=1)   # (15, 20)
    f1_b = jnp.concatenate([d2_ba, s1_ba], axis=1)   # (1, 20)
    f2_w = jnp.concatenate([ffn_w, s2_wa], axis=1)   # (15, predictions + 10)
    f2_b = jnp.concatenate([ffn_b, s2_ba], axis=1)   # (1, predictions + 10)

    return [
        d1_wa.astype(bf16), d1_ba, d1_wb.astype(bf16), d1_bb,
        f1_w.astype(bf16), f1_b,
        d2_wb.astype(bf16), d2_bb,
        f2_w.astype(bf16), f2_b,
        s1_wb.astype(bf16), s1_bb,
        s2_wb.astype(bf16), s2_bb,
    ]


def mymodel_forward(x, kernel_params, state_1, state_2, predictions, *, block_batch=512):
    """Batch-gridded forward.  block_batch sized well under the v7x 32 MiB default
    scoped-VMEM budget (per-tile x + output slab are a few hundred KB at 512 rows)."""
    B, features = x.shape
    total_out = state_1 + state_2 + predictions
    TB = min(B, block_batch)
    grid = (pl.cdiv(B, TB),)

    x_spec = pl.BlockSpec((TB, features), lambda i: (i, 0))
    # weights / biases: full blocks, VMEM-resident across all batch tiles
    w_specs = [pl.BlockSpec(p.shape, lambda i: (0, 0)) for p in kernel_params]
    out_spec = pl.BlockSpec((TB, total_out), lambda i: (i, 0))

    out = pl.pallas_call(
        functools.partial(mymodel_kernel, predictions=predictions),
        out_shape=jax.ShapeDtypeStruct((B, total_out), jnp.float32),
        grid=grid,
        in_specs=[x_spec] + w_specs,
        out_specs=out_spec,
        compiler_params=pltpu.CompilerParams(
            # batch tiles are independent -> shard across the 2 TCs on v7x;
            # harmless (single TC) on v5e/v6e.
            dimension_semantics=("parallel",),
        ),
    )(x, *kernel_params)

    out_1 = out[:, :state_1]
    out_2 = out[:, state_1:state_1 + state_2]
    pred = out[:, state_1 + state_2:]
    return out_1, out_2, pred


def mymodel_ref(x, raw):
    """Pure-JAX f32 reference matching the PyTorch module."""
    def blk(v, wa, ba, wb, bb):
        h = jnp.maximum(v @ wa + ba, 0.0)
        return jnp.maximum(h @ wb + bb, 0.0)

    d1_wa, d1_ba = raw["d1_lin0"]; d1_wb, d1_bb = raw["d1_lin1"]
    d2_wa, d2_ba = raw["d2_lin0"]; d2_wb, d2_bb = raw["d2_lin1"]
    ffn_w, ffn_b = raw["ffn"]
    s1_wa, s1_ba = raw["s1_lin0"]; s1_wb, s1_bb = raw["s1_lin1"]
    s2_wa, s2_ba = raw["s2_lin0"]; s2_wb, s2_bb = raw["s2_lin1"]

    extras_1 = blk(x, d1_wa, d1_ba, d1_wb, d1_bb)
    extras_2 = blk(extras_1, d2_wa, d2_ba, d2_wb, d2_bb)
    pred = extras_2 @ ffn_w + ffn_b
    out_1 = blk(extras_1, s1_wa, s1_ba, s1_wb, s1_bb)
    out_2 = blk(extras_2, s2_wa, s2_ba, s2_wb, s2_bb)
    return out_1, out_2, pred


if __name__ == "__main__":
    # Small, forward-consistent shapes; batch large enough to exercise a 2-step grid.
    features, state_1, state_2, predictions = 8, 16, 32, 4
    batch = 256
    block_batch = 128   # -> grid=(2,), double-buffered x / output tiles

    key = jax.random.PRNGKey(0)
    x = jax.random.normal(key, (batch, features), dtype=jnp.float32)

    raw = make_raw_params(features, state_1, state_2, predictions, seed=0)
    kparams = fuse_params(raw)

    out_1, out_2, pred = mymodel_forward(
        x, kparams, state_1, state_2, predictions, block_batch=block_batch)
    jax.block_until_ready((out_1, out_2, pred))

    r1, r2, rp = mymodel_ref(x, raw)
    assert out_1.shape == (batch, state_1)
    assert out_2.shape == (batch, state_2)
    assert pred.shape == (batch, predictions)
    # Kernel uses bf16 matmuls with f32 accumulation vs the pure-f32 reference,
    # so the tolerance is relaxed accordingly.
    assert jnp.allclose(out_1, r1, atol=3e-2, rtol=3e-2), float(jnp.max(jnp.abs(out_1 - r1)))
    assert jnp.allclose(out_2, r2, atol=3e-2, rtol=3e-2), float(jnp.max(jnp.abs(out_2 - r2)))
    assert jnp.allclose(pred, rp, atol=3e-2, rtol=3e-2), float(jnp.max(jnp.abs(pred - rp)))

    print("KERNEL_OK")
</pallas_src>

<mosaic_0001>
module attributes {stable_mosaic.version = 11 : i64} {
  func.func @mymodel_kernel(%arg0: i32, %arg1: memref<128x8xf32, #tpu.memory_space<vmem>>, %arg2: memref<8x10xbf16, #tpu.memory_space<vmem>>, %arg3: memref<1x10xf32, #tpu.memory_space<vmem>>, %arg4: memref<10x15xbf16, #tpu.memory_space<vmem>>, %arg5: memref<1x15xf32, #tpu.memory_space<vmem>>, %arg6: memref<15x20xbf16, #tpu.memory_space<vmem>>, %arg7: memref<1x20xf32, #tpu.memory_space<vmem>>, %arg8: memref<10x15xbf16, #tpu.memory_space<vmem>>, %arg9: memref<1x15xf32, #tpu.memory_space<vmem>>, %arg10: memref<15x14xbf16, #tpu.memory_space<vmem>>, %arg11: memref<1x14xf32, #tpu.memory_space<vmem>>, %arg12: memref<10x16xbf16, #tpu.memory_space<vmem>>, %arg13: memref<1x16xf32, #tpu.memory_space<vmem>>, %arg14: memref<10x32xbf16, #tpu.memory_space<vmem>>, %arg15: memref<1x32xf32, #tpu.memory_space<vmem>>, %arg16: memref<128x52xf32, #tpu.memory_space<vmem>>) attributes {dimension_semantics = [#tpu.dimension_semantics<parallel>], iteration_bounds = array<i64: 2>, scalar_prefetch = 0 : i64, scratch_operands = 0 : i64, tpu.core_type = #tpu.core_type<tc>, window_params = [{transform_indices = @transform_0, window_bounds = array<i64: 128, 8>}, {pipeline_mode = #tpu.pipeline_mode<synchronous>, transform_indices = @transform_1, window_bounds = array<i64: 8, 10>}, {pipeline_mode = #tpu.pipeline_mode<synchronous>, transform_indices = @transform_2, window_bounds = array<i64: 1, 10>}, {pipeline_mode = #tpu.pipeline_mode<synchronous>, transform_indices = @transform_3, window_bounds = array<i64: 10, 15>}, {pipeline_mode = #tpu.pipeline_mode<synchronous>, transform_indices = @transform_4, window_bounds = array<i64: 1, 15>}, {pipeline_mode = #tpu.pipeline_mode<synchronous>, transform_indices = @transform_5, window_bounds = array<i64: 15, 20>}, {pipeline_mode = #tpu.pipeline_mode<synchronous>, transform_indices = @transform_6, window_bounds = array<i64: 1, 20>}, {pipeline_mode = #tpu.pipeline_mode<synchronous>, transform_indices = @transform_7, window_bounds = array<i64: 10, 15>}, {pipeline_mode = #tpu.pipeline_mode<synchronous>, transform_indices = @transform_8, window_bounds = array<i64: 1, 15>}, {pipeline_mode = #tpu.pipeline_mode<synchronous>, transform_indices = @transform_9, window_bounds = array<i64: 15, 14>}, {pipeline_mode = #tpu.pipeline_mode<synchronous>, transform_indices = @transform_10, window_bounds = array<i64: 1, 14>}, {pipeline_mode = #tpu.pipeline_mode<synchronous>, transform_indices = @transform_11, window_bounds = array<i64: 10, 16>}, {pipeline_mode = #tpu.pipeline_mode<synchronous>, transform_indices = @transform_12, window_bounds = array<i64: 1, 16>}, {pipeline_mode = #tpu.pipeline_mode<synchronous>, transform_indices = @transform_13, window_bounds = array<i64: 10, 32>}, {pipeline_mode = #tpu.pipeline_mode<synchronous>, transform_indices = @transform_14, window_bounds = array<i64: 1, 32>}, {transform_indices = @transform_15, window_bounds = array<i64: 128, 52>}]} {
    %c0 = arith.constant 0 : index
    %c0_0 = arith.constant 0 : index
    %0 = vector.load %arg1[%c0, %c0_0] : memref<128x8xf32, #tpu.memory_space<vmem>>, vector<128x8xf32>
    %1 = arith.truncf %0 : vector<128x8xf32> to vector<128x8xbf16>
    %c0_1 = arith.constant 0 : index
    %c0_2 = arith.constant 0 : index
    %2 = vector.load %arg2[%c0_1, %c0_2] : memref<8x10xbf16, #tpu.memory_space<vmem>>, vector<8x10xbf16>
    %cst = arith.constant dense<0.000000e+00> : vector<128x10xf32>
    %3 = tpu.matmul %1, %2, %cst {dimension_numbers = #tpu.dot_dimension_numbers<[1], [0], [0], [1], [0, 0, 1, 1], [], []>} : vector<128x8xbf16>, vector<8x10xbf16>, vector<128x10xf32> -> vector<128x10xf32>
    %c0_3 = arith.constant 0 : index
    %c0_4 = arith.constant 0 : index
    %4 = vector.load %arg3[%c0_3, %c0_4] : memref<1x10xf32, #tpu.memory_space<vmem>>, vector<1x10xf32>
    %5 = vector.broadcast %4 : vector<1x10xf32> to vector<128x10xf32>
    %6 = arith.addf %3, %5 : vector<128x10xf32>
    %cst_5 = arith.constant 0.000000e+00 : f32
    %7 = vector.broadcast %cst_5 : f32 to vector<128x10xf32>
    %8 = arith.maximumf %6, %7 : vector<128x10xf32>
    %9 = arith.truncf %8 : vector<128x10xf32> to vector<128x10xbf16>
    %c0_6 = arith.constant 0 : index
    %c0_7 = arith.constant 0 : index
    %10 = vector.load %arg4[%c0_6, %c0_7] : memref<10x15xbf16, #tpu.memory_space<vmem>>, vector<10x15xbf16>
    %cst_8 = arith.constant dense<0.000000e+00> : vector<128x15xf32>
    %11 = tpu.matmul %9, %10, %cst_8 {dimension_numbers = #tpu.dot_dimension_numbers<[1], [0], [0], [1], [0, 0, 1, 1], [], []>} : vector<128x10xbf16>, vector<10x15xbf16>, vector<128x15xf32> -> vector<128x15xf32>
    %c0_9 = arith.constant 0 : index
    %c0_10 = arith.constant 0 : index
    %12 = vector.load %arg5[%c0_9, %c0_10] : memref<1x15xf32, #tpu.memory_space<vmem>>, vector<1x15xf32>
    %13 = vector.broadcast %12 : vector<1x15xf32> to vector<128x15xf32>
    %14 = arith.addf %11, %13 : vector<128x15xf32>
    %cst_11 = arith.constant 0.000000e+00 : f32
    %15 = vector.broadcast %cst_11 : f32 to vector<128x15xf32>
    %16 = arith.maximumf %14, %15 : vector<128x15xf32>
    %17 = arith.truncf %16 : vector<128x15xf32> to vector<128x15xbf16>
    %c0_12 = arith.constant 0 : index
    %c0_13 = arith.constant 0 : index
    %18 = vector.load %arg6[%c0_12, %c0_13] : memref<15x20xbf16, #tpu.memory_space<vmem>>, vector<15x20xbf16>
    %cst_14 = arith.constant dense<0.000000e+00> : vector<128x20xf32>
    %19 = tpu.matmul %17, %18, %cst_14 {dimension_numbers = #tpu.dot_dimension_numbers<[1], [0], [0], [1], [0, 0, 1, 1], [], []>} : vector<128x15xbf16>, vector<15x20xbf16>, vector<128x20xf32> -> vector<128x20xf32>
    %c0_15 = arith.constant 0 : index
    %c0_16 = arith.constant 0 : index
    %20 = vector.load %arg7[%c0_15, %c0_16] : memref<1x20xf32, #tpu.memory_space<vmem>>, vector<1x20xf32>
    %21 = vector.broadcast %20 : vector<1x20xf32> to vector<128x20xf32>
    %22 = arith.addf %19, %21 : vector<128x20xf32>
    %cst_17 = arith.constant 0.000000e+00 : f32
    %23 = vector.broadcast %cst_17 : f32 to vector<128x20xf32>
    %24 = arith.maximumf %22, %23 : vector<128x20xf32>
    %25 = arith.truncf %24 : vector<128x20xf32> to vector<128x20xbf16>
    %26 = vector.extract_strided_slice %25 {offsets = [0, 0], sizes = [128, 10], strides = [1, 1]} : vector<128x20xbf16> to vector<128x10xbf16>
    %27 = vector.extract_strided_slice %25 {offsets = [0, 10], sizes = [128, 10], strides = [1, 1]} : vector<128x20xbf16> to vector<128x10xbf16>
    %c0_18 = arith.constant 0 : index
    %c0_19 = arith.constant 0 : index
    %28 = vector.load %arg8[%c0_18, %c0_19] : memref<10x15xbf16, #tpu.memory_space<vmem>>, vector<10x15xbf16>
    %cst_20 = arith.constant dense<0.000000e+00> : vector<128x15xf32>
    %29 = tpu.matmul %26, %28, %cst_20 {dimension_numbers = #tpu.dot_dimension_numbers<[1], [0], [0], [1], [0, 0, 1, 1], [], []>} : vector<128x10xbf16>, vector<10x15xbf16>, vector<128x15xf32> -> vector<128x15xf32>
    %c0_21 = arith.constant 0 : index
    %c0_22 = arith.constant 0 : index
    %30 = vector.load %arg9[%c0_21, %c0_22] : memref<1x15xf32, #tpu.memory_space<vmem>>, vector<1x15xf32>
    %31 = vector.broadcast %30 : vector<1x15xf32> to vector<128x15xf32>
    %32 = arith.addf %29, %31 : vector<128x15xf32>
    %cst_23 = arith.constant 0.000000e+00 : f32
    %33 = vector.broadcast %cst_23 : f32 to vector<128x15xf32>
    %34 = arith.maximumf %32, %33 : vector<128x15xf32>
    %35 = arith.truncf %34 : vector<128x15xf32> to vector<128x15xbf16>
    %c0_24 = arith.constant 0 : index
    %c0_25 = arith.constant 0 : index
    %36 = vector.load %arg10[%c0_24, %c0_25] : memref<15x14xbf16, #tpu.memory_space<vmem>>, vector<15x14xbf16>
    %cst_26 = arith.constant dense<0.000000e+00> : vector<128x14xf32>
    %37 = tpu.matmul %35, %36, %cst_26 {dimension_numbers = #tpu.dot_dimension_numbers<[1], [0], [0], [1], [0, 0, 1, 1], [], []>} : vector<128x15xbf16>, vector<15x14xbf16>, vector<128x14xf32> -> vector<128x14xf32>
    %c0_27 = arith.constant 0 : index
    %c0_28 = arith.constant 0 : index
    %38 = vector.load %arg11[%c0_27, %c0_28] : memref<1x14xf32, #tpu.memory_space<vmem>>, vector<1x14xf32>
    %39 = vector.broadcast %38 : vector<1x14xf32> to vector<128x14xf32>
    %40 = arith.addf %37, %39 : vector<128x14xf32>
    %41 = vector.extract_strided_slice %40 {offsets = [0, 0], sizes = [128, 4], strides = [1, 1]} : vector<128x14xf32> to vector<128x4xf32>
    %42 = vector.extract_strided_slice %40 {offsets = [0, 4], sizes = [128, 10], strides = [1, 1]} : vector<128x14xf32> to vector<128x10xf32>
    %cst_29 = arith.constant 0.000000e+00 : f32
    %43 = vector.broadcast %cst_29 : f32 to vector<128x10xf32>
    %44 = arith.maximumf %42, %43 : vector<128x10xf32>
    %45 = arith.truncf %44 : vector<128x10xf32> to vector<128x10xbf16>
    %c0_30 = arith.constant 0 : index
    %c0_31 = arith.constant 0 : index
    %46 = vector.load %arg12[%c0_30, %c0_31] : memref<10x16xbf16, #tpu.memory_space<vmem>>, vector<10x16xbf16>
    %cst_32 = arith.constant dense<0.000000e+00> : vector<128x16xf32>
    %47 = tpu.matmul %27, %46, %cst_32 {dimension_numbers = #tpu.dot_dimension_numbers<[1], [0], [0], [1], [0, 0, 1, 1], [], []>} : vector<128x10xbf16>, vector<10x16xbf16>, vector<128x16xf32> -> vector<128x16xf32>
    %c0_33 = arith.constant 0 : index
    %c0_34 = arith.constant 0 : index
    %48 = vector.load %arg13[%c0_33, %c0_34] : memref<1x16xf32, #tpu.memory_space<vmem>>, vector<1x16xf32>
    %49 = vector.broadcast %48 : vector<1x16xf32> to vector<128x16xf32>
    %50 = arith.addf %47, %49 : vector<128x16xf32>
    %cst_35 = arith.constant 0.000000e+00 : f32
    %51 = vector.broadcast %cst_35 : f32 to vector<128x16xf32>
    %52 = arith.maximumf %50, %51 : vector<128x16xf32>
    %c0_36 = arith.constant 0 : index
    %c0_37 = arith.constant 0 : index
    %53 = vector.load %arg14[%c0_36, %c0_37] : memref<10x32xbf16, #tpu.memory_space<vmem>>, vector<10x32xbf16>
    %cst_38 = arith.constant dense<0.000000e+00> : vector<128x32xf32>
    %54 = tpu.matmul %45, %53, %cst_38 {dimension_numbers = #tpu.dot_dimension_numbers<[1], [0], [0], [1], [0, 0, 1, 1], [], []>} : vector<128x10xbf16>, vector<10x32xbf16>, vector<128x32xf32> -> vector<128x32xf32>
    %c0_39 = arith.constant 0 : index
    %c0_40 = arith.constant 0 : index
    %55 = vector.load %arg15[%c0_39, %c0_40] : memref<1x32xf32, #tpu.memory_space<vmem>>, vector<1x32xf32>
    %56 = vector.broadcast %55 : vector<1x32xf32> to vector<128x32xf32>
    %57 = arith.addf %54, %56 : vector<128x32xf32>
    %cst_41 = arith.constant 0.000000e+00 : f32
    %58 = vector.broadcast %cst_41 : f32 to vector<128x32xf32>
    %59 = arith.maximumf %57, %58 : vector<128x32xf32>
    %60 = tpu.concatenate %52, %59, %41 in 1 : vector<128x16xf32>, vector<128x32xf32>, vector<128x4xf32> -> vector<128x52xf32>
    %c0_42 = arith.constant 0 : index
    %c0_43 = arith.constant 0 : index
    %61 = vector.load %arg16[%c0_42, %c0_43] : memref<128x52xf32, #tpu.memory_space<vmem>>, vector<128x52xf32>
    tpu.vector_store %arg16[%c0_42, %c0_43], %60 {strides = array<i32>} : memref<128x52xf32, #tpu.memory_space<vmem>>, vector<128x52xf32>,
    return
  }
  func.func @transform_0(%arg0: i32) -> (i32, i32) {
    %c0_i32 = arith.constant 0 : i32
    %c0_i32_0 = arith.constant 0 : i32
    return %arg0, %c0_i32 : i32, i32
  }
  func.func @transform_1(%arg0: i32) -> (i32, i32) {
    %c0_i32 = arith.constant 0 : i32
    %c0_i32_0 = arith.constant 0 : i32
    %c0_i32_1 = arith.constant 0 : i32
    return %c0_i32, %c0_i32_0 : i32, i32
  }
  func.func @transform_2(%arg0: i32) -> (i32, i32) {
    %c0_i32 = arith.constant 0 : i32
    %c0_i32_0 = arith.constant 0 : i32
    %c0_i32_1 = arith.constant 0 : i32
    return %c0_i32, %c0_i32_0 : i32, i32
  }
  func.func @transform_3(%arg0: i32) -> (i32, i32) {
    %c0_i32 = arith.constant 0 : i32
    %c0_i32_0 = arith.constant 0 : i32
    %c0_i32_1 = arith.constant 0 : i32
    return %c0_i32, %c0_i32_0 : i32, i32
  }
  func.func @transform_4(%arg0: i32) -> (i32, i32) {
    %c0_i32 = arith.constant 0 : i32
    %c0_i32_0 = arith.constant 0 : i32
    %c0_i32_1 = arith.constant 0 : i32
    return %c0_i32, %c0_i32_0 : i32, i32
  }
  func.func @transform_5(%arg0: i32) -> (i32, i32) {
    %c0_i32 = arith.constant 0 : i32
    %c0_i32_0 = arith.constant 0 : i32
    %c0_i32_1 = arith.constant 0 : i32
    return %c0_i32, %c0_i32_0 : i32, i32
  }
  func.func @transform_6(%arg0: i32) -> (i32, i32) {
    %c0_i32 = arith.constant 0 : i32
    %c0_i32_0 = arith.constant 0 : i32
    %c0_i32_1 = arith.constant 0 : i32
    return %c0_i32, %c0_i32_0 : i32, i32
  }
  func.func @transform_7(%arg0: i32) -> (i32, i32) {
    %c0_i32 = arith.constant 0 : i32
    %c0_i32_0 = arith.constant 0 : i32
    %c0_i32_1 = arith.constant 0 : i32
    return %c0_i32, %c0_i32_0 : i32, i32
  }
  func.func @transform_8(%arg0: i32) -> (i32, i32) {
    %c0_i32 = arith.constant 0 : i32
    %c0_i32_0 = arith.constant 0 : i32
    %c0_i32_1 = arith.constant 0 : i32
    return %c0_i32, %c0_i32_0 : i32, i32
  }
  func.func @transform_9(%arg0: i32) -> (i32, i32) {
    %c0_i32 = arith.constant 0 : i32
    %c0_i32_0 = arith.constant 0 : i32
    %c0_i32_1 = arith.constant 0 : i32
    return %c0_i32, %c0_i32_0 : i32, i32
  }
  func.func @transform_10(%arg0: i32) -> (i32, i32) {
    %c0_i32 = arith.constant 0 : i32
    %c0_i32_0 = arith.constant 0 : i32
    %c0_i32_1 = arith.constant 0 : i32
    return %c0_i32, %c0_i32_0 : i32, i32
  }
  func.func @transform_11(%arg0: i32) -> (i32, i32) {
    %c0_i32 = arith.constant 0 : i32
    %c0_i32_0 = arith.constant 0 : i32
    %c0_i32_1 = arith.constant 0 : i32
    return %c0_i32, %c0_i32_0 : i32, i32
  }
  func.func @transform_12(%arg0: i32) -> (i32, i32) {
    %c0_i32 = arith.constant 0 : i32
    %c0_i32_0 = arith.constant 0 : i32
    %c0_i32_1 = arith.constant 0 : i32
    return %c0_i32, %c0_i32_0 : i32, i32
  }
  func.func @transform_13(%arg0: i32) -> (i32, i32) {
    %c0_i32 = arith.constant 0 : i32
    %c0_i32_0 = arith.constant 0 : i32
    %c0_i32_1 = arith.constant 0 : i32
    return %c0_i32, %c0_i32_0 : i32, i32
  }
  func.func @transform_14(%arg0: i32) -> (i32, i32) {
    %c0_i32 = arith.constant 0 : i32
    %c0_i32_0 = arith.constant 0 : i32
    %c0_i32_1 = arith.constant 0 : i32
    return %c0_i32, %c0_i32_0 : i32, i32
  }
  func.func @transform_15(%arg0: i32) -> (i32, i32) {
    %c0_i32 = arith.constant 0 : i32
    %c0_i32_0 = arith.constant 0 : i32
    return %arg0, %c0_i32 : i32, i32
  }
}

</mosaic_0001>

<llo_original>
// kernel: tpu_custom_call.1
$region0: #{tpu_custom_call.1}
  #allocation0 [shape = 'u32[]', space=smem, size = 0x4, offset = 0x4, fixed_abs, tag = 'smem constant byte address 0x4 - core index']
  #allocation1 [shape = 'u32[144,128]{1,0:T(1,128)}', space=vmem, size = 0x12000, scoped, tag = 'internal scratch']
  %s0 = inlined_call_operand.vmem [shape: f32[256,8], index: 0, kind: input, shape index: {}]
  %s1 = inlined_call_operand.vmem [shape: bf16[8,10], index: 1, kind: input, shape index: {}]
  %s2 = inlined_call_operand.vmem [shape: f32[1,10], index: 2, kind: input, shape index: {}]
  %s3 = inlined_call_operand.vmem [shape: bf16[10,15], index: 3, kind: input, shape index: {}]
  %s4 = inlined_call_operand.vmem [shape: f32[1,15], index: 4, kind: input, shape index: {}]
  %s5 = inlined_call_operand.vmem [shape: bf16[15,20], index: 5, kind: input, shape index: {}]
  %s6 = inlined_call_operand.vmem [shape: f32[1,20], index: 6, kind: input, shape index: {}]
  %s7 = inlined_call_operand.vmem [shape: bf16[10,15], index: 7, kind: input, shape index: {}]
  %s8 = inlined_call_operand.vmem [shape: f32[1,15], index: 8, kind: input, shape index: {}]
  %s9 = inlined_call_operand.vmem [shape: bf16[15,14], index: 9, kind: input, shape index: {}]
  %s10 = inlined_call_operand.vmem [shape: f32[1,14], index: 10, kind: input, shape index: {}]
  %s11 = inlined_call_operand.vmem [shape: bf16[10,16], index: 11, kind: input, shape index: {}]
  %s12 = inlined_call_operand.vmem [shape: f32[1,16], index: 12, kind: input, shape index: {}]
  %s13 = inlined_call_operand.vmem [shape: bf16[10,32], index: 13, kind: input, shape index: {}]
  %s14 = inlined_call_operand.vmem [shape: f32[1,32], index: 14, kind: input, shape index: {}]
  %s15 = inlined_call_operand.vmem [shape: f32[256,52], index: 15, kind: output, shape index: {}]
  %s16 = sld [smem:[#allocation0]]
  $region93: #{tpu_custom_call.1} parent=0
    _
  %s18 = ssub.s32 1, %s16
  %s19 = scalar_select 0, %s18, %s16
  loop: start=0, step=1, limit=4
  $region2: #{tpu_custom_call.1} parent=0 // loop_pre_header
    _
  $region3: #{tpu_custom_call.1} parent=0 // loop_header
    %s21 = sphi 0, %s25
    %p22 = scmp.ge.s32.totalorder %s21, 4
    %s31 = sphi 0, %s33
    %s34 = sphi 0, %s31
    %s35 = sphi 0, %s34
    %s51 = sphi 0, %s35
    %s55 = sphi 0, %s55
    %s57 = sphi 0, %s55
    %s58 = sphi 0, %s57
    %s72 = sphi 0, %s58
    %s76 = sphi 0, %s76
    %s78 = sphi 0, %s76
    %s79 = sphi 0, %s78
    %s93 = sphi 0, %s79
    %s97 = sphi 0, %s97
    %s99 = sphi 0, %s97
    %s100 = sphi 0, %s99
    %s114 = sphi 0, %s100
    %s118 = sphi 0, %s118
    %s120 = sphi 0, %s118
    %s121 = sphi 0, %s120
    %s135 = sphi 0, %s121
    %s139 = sphi 0, %s139
    %s141 = sphi 0, %s139
    %s142 = sphi 0, %s141
    %s156 = sphi 0, %s142
    %s160 = sphi 0, %s160
    %s162 = sphi 0, %s160
    %s163 = sphi 0, %s162
    %s177 = sphi 0, %s163
    %s181 = sphi 0, %s181
    %s183 = sphi 0, %s181
    %s184 = sphi 0, %s183
    %s198 = sphi 0, %s184
    %s202 = sphi 0, %s202
    %s204 = sphi 0, %s202
    %s205 = sphi 0, %s204
    %s219 = sphi 0, %s205
    %s223 = sphi 0, %s223
    %s225 = sphi 0, %s223
    %s226 = sphi 0, %s225
    %s240 = sphi 0, %s226
    %s244 = sphi 0, %s244
    %s246 = sphi 0, %s244
    %s247 = sphi 0, %s246
    %s261 = sphi 0, %s247
    %s265 = sphi 0, %s265
    %s267 = sphi 0, %s265
    %s268 = sphi 0, %s267
    %s282 = sphi 0, %s268
    %s286 = sphi 0, %s286
    %s288 = sphi 0, %s286
    %s289 = sphi 0, %s288
    %s303 = sphi 0, %s289
    %s307 = sphi 0, %s307
    %s309 = sphi 0, %s307
    %s310 = sphi 0, %s309
    %s324 = sphi 0, %s310
    %s328 = sphi 0, %s328
    %s330 = sphi 0, %s328
    %s331 = sphi 0, %s330
    %s345 = sphi 0, %s331
    %s351 = sphi 0, %s353
    %s354 = sphi 0, %s351
    %s355 = sphi 0, %s354
    %s371 = sphi 0, %s355
  $region4: #{tpu_custom_call.1} parent=0 // loop_header_branch
    %24 = sbr.rel (%p22) target = $region8
  $region5: #{tpu_custom_call.1} parent=0 // loop_body
    %s26 = ssub.s32 %s21, 1
    %s27 = ssub.s32 %s21, 2
    %s28 = sadd.s32 %s21, 1
    %s29 = ssub.s32 %s21, %s28
    %p30 = scmp.eq.s32.totalorder %s29, 0
    %s32 = sadd.s32 %s31, 1
    %s33 = scalar_select %p30, %s31, %s32
    %p36 = pneg %p30
    %p37 = scmp.eq.s32.totalorder %s21, 1
    %p38 = por %p36, %p37
    %p39 = scmp.ne.s32.totalorder %s31, %s34
    %p40 = scmp.eq.s32.totalorder %s21, 0
    %p41 = por %p39, %p40
    %p42 = scmp.ne.s32.totalorder %s31, %s34
    %p43 = scmp.eq.s32.totalorder %s26, 1
    %p44 = por %p42, %p43
    %p45 = scmp.ne.s32.totalorder %s34, %s35
    %p46 = scmp.eq.s32.totalorder %s26, 0
    %p47 = por %p45, %p46
    %p48 = scmp.ne.s32.totalorder %s34, %s35
    %p49 = scmp.eq.s32.totalorder %s27, 1
    %p50 = por %p48, %p49
    %p52 = scmp.ne.s32.totalorder %s35, %s51
    %p53 = scmp.eq.s32.totalorder %s27, 0
    %p54 = por %p52, %p53
    %s56 = sadd.s32 %s55, 1
    %p59 = scmp.eq.s32.totalorder %s21, 1
    %p60 = scmp.ne.s32.totalorder %s55, %s57
    %p61 = scmp.eq.s32.totalorder %s21, 0
    %p62 = por %p60, %p61
    %p63 = scmp.ne.s32.totalorder %s55, %s57
    %p64 = scmp.eq.s32.totalorder %s26, 1
    %p65 = por %p63, %p64
    %p66 = scmp.ne.s32.totalorder %s57, %s58
    %p67 = scmp.eq.s32.totalorder %s26, 0
    %p68 = por %p66, %p67
    %p69 = scmp.ne.s32.totalorder %s57, %s58
    %p70 = scmp.eq.s32.totalorder %s27, 1
    %p71 = por %p69, %p70
    %p73 = scmp.ne.s32.totalorder %s58, %s72
    %p74 = scmp.eq.s32.totalorder %s27, 0
    %p75 = por %p73, %p74
    %s77 = sadd.s32 %s76, 1
    %p80 = scmp.eq.s32.totalorder %s21, 1
    %p81 = scmp.ne.s32.totalorder %s76, %s78
    %p82 = scmp.eq.s32.totalorder %s21, 0
    %p83 = por %p81, %p82
    %p84 = scmp.ne.s32.totalorder %s76, %s78
    %p85 = scmp.eq.s32.totalorder %s26, 1
    %p86 = por %p84, %p85
    %p87 = scmp.ne.s32.totalorder %s78, %s79
    %p88 = scmp.eq.s32.totalorder %s26, 0
    %p89 = por %p87, %p88
    %p90 = scmp.ne.s32.totalorder %s78, %s79
    %p91 = scmp.eq.s32.totalorder %s27, 1
    %p92 = por %p90, %p91
    %p94 = scmp.ne.s32.totalorder %s79, %s93
    %p95 = scmp.eq.s32.totalorder %s27, 0
    %p96 = por %p94, %p95
    %s98 = sadd.s32 %s97, 1
    %p101 = scmp.eq.s32.totalorder %s21, 1
    %p102 = scmp.ne.s32.totalorder %s97, %s99
    %p103 = scmp.eq.s32.totalorder %s21, 0
    %p104 = por %p102, %p103
    %p105 = scmp.ne.s32.totalorder %s97, %s99
    %p106 = scmp.eq.s32.totalorder %s26, 1
    %p107 = por %p105, %p106
    %p108 = scmp.ne.s32.totalorder %s99, %s100
    %p109 = scmp.eq.s32.totalorder %s26, 0
    %p110 = por %p108, %p109
    %p111 = scmp.ne.s32.totalorder %s99, %s100
    %p112 = scmp.eq.s32.totalorder %s27, 1
    %p113 = por %p111, %p112
    %p115 = scmp.ne.s32.totalorder %s100, %s114
    %p116 = scmp.eq.s32.totalorder %s27, 0
    %p117 = por %p115, %p116
    %s119 = sadd.s32 %s118, 1
    %p122 = scmp.eq.s32.totalorder %s21, 1
    %p123 = scmp.ne.s32.totalorder %s118, %s120
    %p124 = scmp.eq.s32.totalorder %s21, 0
    %p125 = por %p123, %p124
    %p126 = scmp.ne.s32.totalorder %s118, %s120
    %p127 = scmp.eq.s32.totalorder %s26, 1
    %p128 = por %p126, %p127
    %p129 = scmp.ne.s32.totalorder %s120, %s121
    %p130 = scmp.eq.s32.totalorder %s26, 0
    %p131 = por %p129, %p130
    %p132 = scmp.ne.s32.totalorder %s120, %s121
    %p133 = scmp.eq.s32.totalorder %s27, 1
    %p134 = por %p132, %p133
    %p136 = scmp.ne.s32.totalorder %s121, %s135
    %p137 = scmp.eq.s32.totalorder %s27, 0
    %p138 = por %p136, %p137
    %s140 = sadd.s32 %s139, 1
    %p143 = scmp.eq.s32.totalorder %s21, 1
    %p144 = scmp.ne.s32.totalorder %s139, %s141
    %p145 = scmp.eq.s32.totalorder %s21, 0
    %p146 = por %p144, %p145
    %p147 = scmp.ne.s32.totalorder %s139, %s141
    %p148 = scmp.eq.s32.totalorder %s26, 1
    %p149 = por %p147, %p148
    %p150 = scmp.ne.s32.totalorder %s141, %s142
    %p151 = scmp.eq.s32.totalorder %s26, 0
    %p152 = por %p150, %p151
    %p153 = scmp.ne.s32.totalorder %s141, %s142
    %p154 = scmp.eq.s32.totalorder %s27, 1
    %p155 = por %p153, %p154
    %p157 = scmp.ne.s32.totalorder %s142, %s156
    %p158 = scmp.eq.s32.totalorder %s27, 0
    %p159 = por %p157, %p158
    %s161 = sadd.s32 %s160, 1
    %p164 = scmp.eq.s32.totalorder %s21, 1
    %p165 = scmp.ne.s32.totalorder %s160, %s162
    %p166 = scmp.eq.s32.totalorder %s21, 0
    %p167 = por %p165, %p166
    %p168 = scmp.ne.s32.totalorder %s160, %s162
    %p169 = scmp.eq.s32.totalorder %s26, 1
    %p170 = por %p168, %p169
    %p171 = scmp.ne.s32.totalorder %s162, %s163
    %p172 = scmp.eq.s32.totalorder %s26, 0
    %p173 = por %p171, %p172
    %p174 = scmp.ne.s32.totalorder %s162, %s163
    %p175 = scmp.eq.s32.totalorder %s27, 1
    %p176 = por %p174, %p175
    %p178 = scmp.ne.s32.totalorder %s163, %s177
    %p179 = scmp.eq.s32.totalorder %s27, 0
    %p180 = por %p178, %p179
    %s182 = sadd.s32 %s181, 1
    %p185 = scmp.eq.s32.totalorder %s21, 1
    %p186 = scmp.ne.s32.totalorder %s181, %s183
    %p187 = scmp.eq.s32.totalorder %s21, 0
    %p188 = por %p186, %p187
    %p189 = scmp.ne.s32.totalorder %s181, %s183
    %p190 = scmp.eq.s32.totalorder %s26, 1
    %p191 = por %p189, %p190
    %p192 = scmp.ne.s32.totalorder %s183, %s184
    %p193 = scmp.eq.s32.totalorder %s26, 0
    %p194 = por %p192, %p193
    %p195 = scmp.ne.s32.totalorder %s183, %s184
    %p196 = scmp.eq.s32.totalorder %s27, 1
    %p197 = por %p195, %p196
    %p199 = scmp.ne.s32.totalorder %s184, %s198
    %p200 = scmp.eq.s32.totalorder %s27, 0
    %p201 = por %p199, %p200
    %s203 = sadd.s32 %s202, 1
    %p206 = scmp.eq.s32.totalorder %s21, 1
    %p207 = scmp.ne.s32.totalorder %s202, %s204
    %p208 = scmp.eq.s32.totalorder %s21, 0
    %p209 = por %p207, %p208
    %p210 = scmp.ne.s32.totalorder %s202, %s204
    %p211 = scmp.eq.s32.totalorder %s26, 1
    %p212 = por %p210, %p211
    %p213 = scmp.ne.s32.totalorder %s204, %s205
    %p214 = scmp.eq.s32.totalorder %s26, 0
    %p215 = por %p213, %p214
    %p216 = scmp.ne.s32.totalorder %s204, %s205
    %p217 = scmp.eq.s32.totalorder %s27, 1
    %p218 = por %p216, %p217
    %p220 = scmp.ne.s32.totalorder %s205, %s219
    %p221 = scmp.eq.s32.totalorder %s27, 0
    %p222 = por %p220, %p221
    %s224 = sadd.s32 %s223, 1
    %p227 = scmp.eq.s32.totalorder %s21, 1
    %p228 = scmp.ne.s32.totalorder %s223, %s225
    %p229 = scmp.eq.s32.totalorder %s21, 0
    %p230 = por %p228, %p229
    %p231 = scmp.ne.s32.totalorder %s223, %s225
    %p232 = scmp.eq.s32.totalorder %s26, 1
    %p233 = por %p231, %p232
    %p234 = scmp.ne.s32.totalorder %s225, %s226
    %p235 = scmp.eq.s32.totalorder %s26, 0
    %p236 = por %p234, %p235
    %p237 = scmp.ne.s32.totalorder %s225, %s226
    %p238 = scmp.eq.s32.totalorder %s27, 1
    %p239 = por %p237, %p238
    %p241 = scmp.ne.s32.totalorder %s226, %s240
    %p242 = scmp.eq.s32.totalorder %s27, 0
    %p243 = por %p241, %p242
    %s245 = sadd.s32 %s244, 1
    %p248 = scmp.eq.s32.totalorder %s21, 1
    %p249 = scmp.ne.s32.totalorder %s244, %s246
    %p250 = scmp.eq.s32.totalorder %s21, 0
    %p251 = por %p249, %p250
    %p252 = scmp.ne.s32.totalorder %s244, %s246
    %p253 = scmp.eq.s32.totalorder %s26, 1
    %p254 = por %p252, %p253
    %p255 = scmp.ne.s32.totalorder %s246, %s247
    %p256 = scmp.eq.s32.totalorder %s26, 0
    %p257 = por %p255, %p256
    %p258 = scmp.ne.s32.totalorder %s246, %s247
    %p259 = scmp.eq.s32.totalorder %s27, 1
    %p260 = por %p258, %p259
    %p262 = scmp.ne.s32.totalorder %s247, %s261
    %p263 = scmp.eq.s32.totalorder %s27, 0
    %p264 = por %p262, %p263
    %s266 = sadd.s32 %s265, 1
    %p269 = scmp.eq.s32.totalorder %s21, 1
    %p270 = scmp.ne.s32.totalorder %s265, %s267
    %p271 = scmp.eq.s32.totalorder %s21, 0
    %p272 = por %p270, %p271
    %p273 = scmp.ne.s32.totalorder %s265, %s267
    %p274 = scmp.eq.s32.totalorder %s26, 1
    %p275 = por %p273, %p274
    %p276 = scmp.ne.s32.totalorder %s267, %s268
    %p277 = scmp.eq.s32.totalorder %s26, 0
    %p278 = por %p276, %p277
    %p279 = scmp.ne.s32.totalorder %s267, %s268
    %p280 = scmp.eq.s32.totalorder %s27, 1
    %p281 = por %p279, %p280
    %p283 = scmp.ne.s32.totalorder %s268, %s282
    %p284 = scmp.eq.s32.totalorder %s27, 0
    %p285 = por %p283, %p284
    %s287 = sadd.s32 %s286, 1
    %p290 = scmp.eq.s32.totalorder %s21, 1
    %p291 = scmp.ne.s32.totalorder %s286, %s288
    %p292 = scmp.eq.s32.totalorder %s21, 0
    %p293 = por %p291, %p292
    %p294 = scmp.ne.s32.totalorder %s286, %s288
    %p295 = scmp.eq.s32.totalorder %s26, 1
    %p296 = por %p294, %p295
    %p297 = scmp.ne.s32.totalorder %s288, %s289
    %p298 = scmp.eq.s32.totalorder %s26, 0
    %p299 = por %p297, %p298
    %p300 = scmp.ne.s32.totalorder %s288, %s289
    %p301 = scmp.eq.s32.totalorder %s27, 1
    %p302 = por %p300, %p301
    %p304 = scmp.ne.s32.totalorder %s289, %s303
    %p305 = scmp.eq.s32.totalorder %s27, 0
    %p306 = por %p304, %p305
    %s308 = sadd.s32 %s307, 1
    %p311 = scmp.eq.s32.totalorder %s21, 1
    %p312 = scmp.ne.s32.totalorder %s307, %s309
    %p313 = scmp.eq.s32.totalorder %s21, 0
    %p314 = por %p312, %p313
    %p315 = scmp.ne.s32.totalorder %s307, %s309
    %p316 = scmp.eq.s32.totalorder %s26, 1
    %p317 = por %p315, %p316
    %p318 = scmp.ne.s32.totalorder %s309, %s310
    %p319 = scmp.eq.s32.totalorder %s26, 0
    %p320 = por %p318, %p319
    %p321 = scmp.ne.s32.totalorder %s309, %s310
    %p322 = scmp.eq.s32.totalorder %s27, 1
    %p323 = por %p321, %p322
    %p325 = scmp.ne.s32.totalorder %s310, %s324
    %p326 = scmp.eq.s32.totalorder %s27, 0
    %p327 = por %p325, %p326
    %s329 = sadd.s32 %s328, 1
    %p332 = scmp.eq.s32.totalorder %s21, 1
    %p333 = scmp.ne.s32.totalorder %s328, %s330
    %p334 = scmp.eq.s32.totalorder %s21, 0
    %p335 = por %p333, %p334
    %p336 = scmp.ne.s32.totalorder %s328, %s330
    %p337 = scmp.eq.s32.totalorder %s26, 1
    %p338 = por %p336, %p337
    %p339 = scmp.ne.s32.totalorder %s330, %s331
    %p340 = scmp.eq.s32.totalorder %s26, 0
    %p341 = por %p339, %p340
    %p342 = scmp.ne.s32.totalorder %s330, %s331
    %p343 = scmp.eq.s32.totalorder %s27, 1
    %p344 = por %p342, %p343
    %p346 = scmp.ne.s32.totalorder %s331, %s345
    %p347 = scmp.eq.s32.totalorder %s27, 0
    %p348 = por %p346, %p347
    %s349 = ssub.s32 %s21, %s28
    %p350 = scmp.eq.s32.totalorder %s349, 0
    %s352 = sadd.s32 %s351, 1
    %s353 = scalar_select %p350, %s351, %s352
    %p356 = pneg %p350
    %p357 = scmp.eq.s32.totalorder %s21, 1
    %p358 = por %p356, %p357
    %p359 = scmp.ne.s32.totalorder %s351, %s354
    %p360 = scmp.eq.s32.totalorder %s21, 0
    %p361 = por %p359, %p360
    %p362 = scmp.ne.s32.totalorder %s351, %s354
    %p363 = scmp.eq.s32.totalorder %s26, 1
    %p364 = por %p362, %p363
    %p365 = scmp.ne.s32.totalorder %s354, %s355
    %p366 = scmp.eq.s32.totalorder %s26, 0
    %p367 = por %p365, %p366
    %p368 = scmp.ne.s32.totalorder %s354, %s355
    %p369 = scmp.eq.s32.totalorder %s27, 1
    %p370 = por %p368, %p369
    %p372 = scmp.ne.s32.totalorder %s355, %s371
    %p373 = scmp.eq.s32.totalorder %s27, 0
    %p374 = por %p372, %p373
    %p375 = scmp.le.s32.totalorder 1, %s21
    %p376 = scmp.lt.s32.totalorder %s21, 3
    %p377 = pnand %p375, %p376
    %p378 = pneg %p377
    // Predicated region
    $region9: #{tpu_custom_call.1} parent=5 // pred_check
      _
    $region10: #{tpu_custom_call.1} parent=5 // pred_check_branch
      %380 = sbr.rel (%p377) target = $region12
    $region11: #{tpu_custom_call.1} parent=5 // pred_region
      %s381 = ssub.s32 %s21, 1
      // Predicated region
      $region13: #{tpu_custom_call.1} parent=11 // pred_check
        %p382 = pneg %p68
      $region14: #{tpu_custom_call.1} parent=11 // pred_check_branch
        %384 = sbr.rel (%p382) target = $region16
      $region15: #{tpu_custom_call.1} parent=11 // pred_region
        _
      $region16: #{tpu_custom_call.1} parent=11 // pred_fallthru
        _
      // Predicated region
      $region17: #{tpu_custom_call.1} parent=11 // pred_check
        %p385 = pneg %p89
      $region18: #{tpu_custom_call.1} parent=11 // pred_check_branch
        %387 = sbr.rel (%p385) target = $region20
      $region19: #{tpu_custom_call.1} parent=11 // pred_region
        _
      $region20: #{tpu_custom_call.1} parent=11 // pred_fallthru
        _
      // Predicated region
      $region21: #{tpu_custom_call.1} parent=11 // pred_check
        %p388 = pneg %p110
      $region22: #{tpu_custom_call.1} parent=11 // pred_check_branch
        %390 = sbr.rel (%p388) target = $region24
      $region23: #{tpu_custom_call.1} parent=11 // pred_region
        _
      $region24: #{tpu_custom_call.1} parent=11 // pred_fallthru
        _
      // Predicated region
      $region25: #{tpu_custom_call.1} parent=11 // pred_check
        %p391 = pneg %p131
      $region26: #{tpu_custom_call.1} parent=11 // pred_check_branch
        %393 = sbr.rel (%p391) target = $region28
      $region27: #{tpu_custom_call.1} parent=11 // pred_region
        _
      $region28: #{tpu_custom_call.1} parent=11 // pred_fallthru
        _
      // Predicated region
      $region29: #{tpu_custom_call.1} parent=11 // pred_check
        %p394 = pneg %p152
      $region30: #{tpu_custom_call.1} parent=11 // pred_check_branch
        %396 = sbr.rel (%p394) target = $region32
      $region31: #{tpu_custom_call.1} parent=11 // pred_region
        _
      $region32: #{tpu_custom_call.1} parent=11 // pred_fallthru
        _
      // Predicated region
      $region33: #{tpu_custom_call.1} parent=11 // pred_check
        %p397 = pneg %p173
      $region34: #{tpu_custom_call.1} parent=11 // pred_check_branch
        %399 = sbr.rel (%p397) target = $region36
      $region35: #{tpu_custom_call.1} parent=11 // pred_region
        _
      $region36: #{tpu_custom_call.1} parent=11 // pred_fallthru
        _
      // Predicated region
      $region37: #{tpu_custom_call.1} parent=11 // pred_check
        %p400 = pneg %p194
      $region38: #{tpu_custom_call.1} parent=11 // pred_check_branch
        %402 = sbr.rel (%p400) target = $region40
      $region39: #{tpu_custom_call.1} parent=11 // pred_region
        _
      $region40: #{tpu_custom_call.1} parent=11 // pred_fallthru
        _
      // Predicated region
      $region41: #{tpu_custom_call.1} parent=11 // pred_check
        %p403 = pneg %p215
      $region42: #{tpu_custom_call.1} parent=11 // pred_check_branch
        %405 = sbr.rel (%p403) target = $region44
      $region43: #{tpu_custom_call.1} parent=11 // pred_region
        _
      $region44: #{tpu_custom_call.1} parent=11 // pred_fallthru
        _
      // Predicated region
      $region45: #{tpu_custom_call.1} parent=11 // pred_check
        %p406 = pneg %p236
      $region46: #{tpu_custom_call.1} parent=11 // pred_check_branch
        %408 = sbr.rel (%p406) target = $region48
      $region47: #{tpu_custom_call.1} parent=11 // pred_region
        _
      $region48: #{tpu_custom_call.1} parent=11 // pred_fallthru
        _
      // Predicated region
      $region49: #{tpu_custom_call.1} parent=11 // pred_check
        %p409 = pneg %p257
      $region50: #{tpu_custom_call.1} parent=11 // pred_check_branch
        %411 = sbr.rel (%p409) target = $region52
      $region51: #{tpu_custom_call.1} parent=11 // pred_region
        _
      $region52: #{tpu_custom_call.1} parent=11 // pred_fallthru
        _
      // Predicated region
      $region53: #{tpu_custom_call.1} parent=11 // pred_check
        %p412 = pneg %p278
      $region54: #{tpu_custom_call.1} parent=11 // pred_check_branch
        %414 = sbr.rel (%p412) target = $region56
      $region55: #{tpu_custom_call.1} parent=11 // pred_region
        _
      $region56: #{tpu_custom_call.1} parent=11 // pred_fallthru
        _
      // Predicated region
      $region57: #{tpu_custom_call.1} parent=11 // pred_check
        %p415 = pneg %p299
      $region58: #{tpu_custom_call.1} parent=11 // pred_check_branch
        %417 = sbr.rel (%p415) target = $region60
      $region59: #{tpu_custom_call.1} parent=11 // pred_region
        _
      $region60: #{tpu_custom_call.1} parent=11 // pred_fallthru
        _
      // Predicated region
      $region61: #{tpu_custom_call.1} parent=11 // pred_check
        %p418 = pneg %p320
      $region62: #{tpu_custom_call.1} parent=11 // pred_check_branch
        %420 = sbr.rel (%p418) target = $region64
      $region63: #{tpu_custom_call.1} parent=11 // pred_region
        _
      $region64: #{tpu_custom_call.1} parent=11 // pred_fallthru
        _
      // Predicated region
      $region65: #{tpu_custom_call.1} parent=11 // pred_check
        %p421 = pneg %p341
      $region66: #{tpu_custom_call.1} parent=11 // pred_check_branch
        %423 = sbr.rel (%p421) target = $region68
      $region67: #{tpu_custom_call.1} parent=11 // pred_region
        _
      $region68: #{tpu_custom_call.1} parent=11 // pred_fallthru
        _
    $region12: #{tpu_custom_call.1} parent=5 // pred_fallthru
      _
    %p424 = scmp.lt.s32.totalorder %s21, 2
    // Predicated region
    $region69: #{tpu_custom_call.1} parent=5 // pred_check
      %p425 = pneg %p424
    $region70: #{tpu_custom_call.1} parent=5 // pred_check_branch
      %427 = sbr.rel (%p425) target = $region72
    $region71: #{tpu_custom_call.1} parent=5 // pred_region
      // Predicated region
      $region73: #{tpu_custom_call.1} parent=71 // pred_check
        %p428 = pneg %p41
      $region74: #{tpu_custom_call.1} parent=71 // pred_check_branch
        %430 = sbr.rel (%p428) target = $region76
      $region75: #{tpu_custom_call.1} parent=71 // pred_region
        %s431 = smul.u32 16, %s21
        %p432 = scmp.lt.s32.totalorder %s431, 31
        %s433 = scalar_select %p432, %s431, 31
        %s434 = smul.addr %s433, 8
        %s435 = scalar_lea.vmem %s0, %s434
        %s436 = smul.u32 16, %s21
      $region76: #{tpu_custom_call.1} parent=71 // pred_fallthru
        _
    $region72: #{tpu_custom_call.1} parent=5 // pred_fallthru
      _
    %p437 = scmp.le.s32.totalorder 1, %s21
    %p438 = scmp.lt.s32.totalorder %s21, 3
    %p439 = pnand %p437, %p438
    %p440 = pneg %p439
    // Predicated region
    $region77: #{tpu_custom_call.1} parent=5 // pred_check
      _
    $region78: #{tpu_custom_call.1} parent=5 // pred_check_branch
      %442 = sbr.rel (%p439) target = $region80
    $region79: #{tpu_custom_call.1} parent=5 // pred_region
      %s443 = ssub.s32 %s21, 1
      %s444 = smul.u32 16, %s26
      %p445 = scmp.lt.s32.totalorder %s444, 31
      %s446 = scalar_select %p445, %s444, 31
      %s447 = smul.addr %s446, 8
      %s448 = scalar_lea.vmem %s0, %s447
      %p449 = pneg %p47
      %p450 = pneg %p44
      %p451 = pneg %p68
      %p452 = pneg %p65
      %p453 = pneg %p89
      %p454 = pneg %p86
      %p455 = pneg %p110
      %p456 = pneg %p107
      %p457 = pneg %p131
      %p458 = pneg %p128
      %p459 = pneg %p152
      %p460 = pneg %p149
      %p461 = pneg %p173
      %p462 = pneg %p170
      %p463 = pneg %p194
      %p464 = pneg %p191
      %p465 = pneg %p215
      %p466 = pneg %p212
      %p467 = pneg %p236
      %p468 = pneg %p233
      %p469 = pneg %p257
      %p470 = pneg %p254
      %p471 = pneg %p278
      %p472 = pneg %p275
      %p473 = pneg %p299
      %p474 = pneg %p296
      %p475 = pneg %p320
      %p476 = pneg %p317
      %p477 = pneg %p341
      %p478 = pneg %p338
      %p479 = pneg %p367
      %p480 = pneg %p364
      %s481 = smul.u32 16, %s26
      %p482 = scmp.lt.s32.totalorder %s481, 31
      %s483 = scalar_select %p482, %s481, 31
      %s484 = smul.addr %s483, 8
      %s485 = scalar_lea.vmem %s15, %s484
      %s486 = smul.u32 16, %s26
      %p487 = scmp.lt.s32.totalorder %s486, 31
      %s488 = scalar_select %p487, %s486, 31
      %s489 = smul.addr %s488, 8
      %s490 = scalar_lea.vmem %s0, %s489
      %s491 = smul.u32 16, %s26
      %s492 = smul.u32 16, %s26
      %p493 = scmp.lt.s32.totalorder %s492, 31
      %s494 = scalar_select %p493, %s492, 31
      %s495 = smul.addr %s494, 8
      %s496 = scalar_lea.vmem %s15, %s495
      %s497 = smul.u32 16, %s26
      %v499 = vld [vmem:[%s490] sm:$0xff]
      %v500 = vld [vmem:[%s490 + $0x8] sm:$0xff]
      %v501 = vld [vmem:[%s490 + $0x10] sm:$0xff]
      %v502 = vld [vmem:[%s490 + $0x18] sm:$0xff]
      %v503 = vld [vmem:[%s490 + $0x20] sm:$0xff]
      %v504 = vld [vmem:[%s490 + $0x28] sm:$0xff]
      %v505 = vld [vmem:[%s490 + $0x30] sm:$0xff]
      %v506 = vld [vmem:[%s490 + $0x38] sm:$0xff]
      %v507 = vld [vmem:[%s490 + $0x40] sm:$0xff]
      %v508 = vld [vmem:[%s490 + $0x48] sm:$0xff]
      %v509 = vld [vmem:[%s490 + $0x50] sm:$0xff]
      %v510 = vld [vmem:[%s490 + $0x58] sm:$0xff]
      %v511 = vld [vmem:[%s490 + $0x60] sm:$0xff]
      %v512 = vld [vmem:[%s490 + $0x68] sm:$0xff]
      %v513 = vld [vmem:[%s490 + $0x70] sm:$0xff]
      %v514 = vld [vmem:[%s490 + $0x78] sm:$0xff]
      %v515 = vpack.c.bf16 %v500, %v499
      %v516 = vpack.c.bf16 %v502, %v501
      %v517 = vpack.c.bf16 %v504, %v503
      %v518 = vpack.c.bf16 %v506, %v505
      %v519 = vpack.c.bf16 %v508, %v507
      %v520 = vpack.c.bf16 %v510, %v509
      %v521 = vpack.c.bf16 %v512, %v511
      %v522 = vpack.c.bf16 %v514, %v513
      %v523 = vld [vmem:[%s1] sm:$0xf]
      %v524 = vld [vmem:[%s2] sm:$0x1]
      %v526 = vlaneseq
      %v527 = vshrl.u32 %v526, 7
      %v528 = vsub.s32 0, %v527
      %v529 = vrot.slane %v524, %v528
      %vm531 = vcmask 64512
      %v533 = vsel %vm531, %v515, 0
      %v536 = vsel %vm531, %v516, 0
      %v539 = vsel %vm531, %v517, 0
      %v542 = vsel %vm531, %v518, 0
      %v545 = vsel %vm531, %v519, 0
      %v548 = vsel %vm531, %v520, 0
      %v551 = vsel %vm531, %v521, 0
      %v554 = vsel %vm531, %v522, 0
      %vm556 = vcmask 1043456
      %v558 = vsel %vm556, %v523, 0
      %560 = vmatprep.subr.bf16.mxu0 0
      %561 = vmatpush1.bf16.msra.mxu0 0
      %562 = vmatprep.subr.bf16.mxu0 0
      %563 = vmatpush1.bf16.msra.mxu0 0
      %564 = vmatprep.subr.bf16.mxu0 0
      %565 = vmatpush1.bf16.msra.mxu0 0
      %566 = vmatprep.subr.bf16.mxu0 0
      %567 = vmatpush1.bf16.msra.mxu0 0
      %568 = vmatprep.subr.bf16.mxu0 0
      %569 = vmatpush1.bf16.msra.mxu0 0
      %570 = vmatprep.subr.bf16.mxu0 0
      %571 = vmatpush1.bf16.msra.mxu0 0
      %572 = vmatprep.subr.bf16.mxu0 0
      %573 = vmatpush1.bf16.msra.mxu0 0
      %574 = vmatprep.subr.bf16.mxu0 0
      %575 = vmatpush1.bf16.msra.mxu0 %v558
      %576 = vmatprep.subr.bf16.mxu0 0
      %577 = vmatpush2.bf16.msra.mxu0 0
      %578 = vmatprep.subr.bf16.mxu0 0
      %579 = vmatpush2.bf16.msra.mxu0 0
      %580 = vmatprep.subr.bf16.mxu0 0
      %581 = vmatpush2.bf16.msra.mxu0 0
      %582 = vmatprep.subr.bf16.mxu0 0
      %583 = vmatpush2.bf16.msra.mxu0 0
      %584 = vmatprep.subr.bf16.mxu0 0
      %585 = vmatpush2.bf16.msra.mxu0 0
      %586 = vmatprep.subr.bf16.mxu0 0
      %587 = vmatpush2.bf16.msra.mxu0 0
      %588 = vmatprep.subr.bf16.mxu0 0
      %589 = vmatpush2.bf16.msra.mxu0 0
      %590 = vmatprep.subr.bf16.mxu0 0
      %591 = vmatpush2.bf16.msra.mxu0 0
      %592 = vmatprep.mubr.bf16.mxu0 0
      %593 = vmatmul.mubr.bf16.gmra.mxu0 %v533
      %v594 = vpop.f32.mrf.mxu0
      %v595 = vadd.f32 %v529, %v594
      %v596 = vpop.f32.mrf.mxu0
      %v597 = vpop.f32.mrf.mxu0
      %v598 = vadd.f32 %v529, %v597
      %v599 = vpop.f32.mrf.mxu0
      %600 = vmatprep.mubr.bf16.mxu0 0
      %601 = vmatmul.mubr.bf16.gmra.mxu0 %v536
      %v602 = vpop.f32.mrf.mxu0
      %v603 = vadd.f32 %v529, %v602
      %v604 = vpop.f32.mrf.mxu0
      %v605 = vpop.f32.mrf.mxu0
      %v606 = vadd.f32 %v529, %v605
      %v607 = vpop.f32.mrf.mxu0
      %608 = vmatprep.mubr.bf16.mxu0 0
      %609 = vmatmul.mubr.bf16.gmra.mxu0 %v539
      %v610 = vpop.f32.mrf.mxu0
      %v611 = vadd.f32 %v529, %v610
      %v612 = vpop.f32.mrf.mxu0
      %v613 = vpop.f32.mrf.mxu0
      %v614 = vadd.f32 %v529, %v613
      %v615 = vpop.f32.mrf.mxu0
      %616 = vmatprep.mubr.bf16.mxu0 0
      %617 = vmatmul.mubr.bf16.gmra.mxu0 %v542
      %v618 = vpop.f32.mrf.mxu0
      %v619 = vadd.f32 %v529, %v618
      %v620 = vpop.f32.mrf.mxu0
      %v621 = vpop.f32.mrf.mxu0
      %v622 = vadd.f32 %v529, %v621
      %v623 = vpop.f32.mrf.mxu0
      %624 = vmatprep.mubr.bf16.mxu0 0
      %625 = vmatmul.mubr.bf16.gmra.mxu0 %v545
      %v626 = vpop.f32.mrf.mxu0
      %v627 = vadd.f32 %v529, %v626
      %v628 = vpop.f32.mrf.mxu0
      %v629 = vpop.f32.mrf.mxu0
      %v630 = vadd.f32 %v529, %v629
      %v631 = vpop.f32.mrf.mxu0
      %632 = vmatprep.mubr.bf16.mxu0 0
      %633 = vmatmul.mubr.bf16.gmra.mxu0 %v548
      %v634 = vpop.f32.mrf.mxu0
      %v635 = vadd.f32 %v529, %v634
      %v636 = vpop.f32.mrf.mxu0
      %v637 = vpop.f32.mrf.mxu0
      %v638 = vadd.f32 %v529, %v637
      %v639 = vpop.f32.mrf.mxu0
      %640 = vmatprep.mubr.bf16.mxu0 0
      %641 = vmatmul.mubr.bf16.gmra.mxu0 %v551
      %v642 = vpop.f32.mrf.mxu0
      %v643 = vadd.f32 %v529, %v642
      %v644 = vpop.f32.mrf.mxu0
      %v645 = vpop.f32.mrf.mxu0
      %v646 = vadd.f32 %v529, %v645
      %v647 = vpop.f32.mrf.mxu0
      %648 = vmatprep.mubr.bf16.mxu0 0
      %649 = vmatmul.mubr.bf16.gmra.mxu0 %v554
      %v650 = vpop.f32.mrf.mxu0
      %v651 = vadd.f32 %v529, %v650
      %v652 = vpop.f32.mrf.mxu0
      %v653 = vpop.f32.mrf.mxu0
      %v654 = vadd.f32 %v529, %v653
      %v655 = vpop.f32.mrf.mxu0
      %656 = vdwg.mxu0
      %v657 = vmax.f32 %v595, 0.0
      %v658 = vmax.f32 %v598, 0.0
      %v659 = vmax.f32 %v603, 0.0
      %v660 = vmax.f32 %v606, 0.0
      %v661 = vmax.f32 %v611, 0.0
      %v662 = vmax.f32 %v614, 0.0
      %v663 = vmax.f32 %v619, 0.0
      %v664 = vmax.f32 %v622, 0.0
      %v665 = vmax.f32 %v627, 0.0
      %v666 = vmax.f32 %v630, 0.0
      %v667 = vmax.f32 %v635, 0.0
      %v668 = vmax.f32 %v638, 0.0
      %v669 = vmax.f32 %v643, 0.0
      %v670 = vmax.f32 %v646, 0.0
      %v671 = vmax.f32 %v651, 0.0
      %v672 = vmax.f32 %v654, 0.0
      %v673 = vpack.c.bf16 %v658, %v657
      %v674 = vpack.c.bf16 %v660, %v659
      %v675 = vpack.c.bf16 %v662, %v661
      %v676 = vpack.c.bf16 %v664, %v663
      %v677 = vpack.c.bf16 %v666, %v665
      %v678 = vpack.c.bf16 %v668, %v667
      %v679 = vpack.c.bf16 %v670, %v669
      %v680 = vpack.c.bf16 %v672, %v671
      %v681 = vld [vmem:[%s3] sm:$0xf]
      %v682 = vld [vmem:[%s3 + $0x4] sm:$0x1]
      %v683 = vld [vmem:[%s4] sm:$0x1]
      %v685 = vlaneseq
      %v686 = vshrl.u32 %v685, 7
      %v687 = vsub.s32 0, %v686
      %v688 = vrot.slane %v683, %v687
      %v692 = vunpack.c.l.b16 %v681
      %v693 = vunpack.c.l.b16 %v682
      %v694 = vpack.c.b16 %v693, %v692
      %vm695 = vcmask 80896
      %v697 = vsel %vm695, %v673, 0
      %v700 = vsel %vm695, %v674, 0
      %v703 = vsel %vm695, %v675, 0
      %v706 = vsel %vm695, %v676, 0
      %v709 = vsel %vm695, %v677, 0
      %v712 = vsel %vm695, %v678, 0
      %v715 = vsel %vm695, %v679, 0
      %v718 = vsel %vm695, %v680, 0
      %vm720 = vcmask 1044480
      %v722 = vsel %vm720, %v694, 0
      %724 = vmatprep.subr.bf16.mxu0 0
      %725 = vmatpush1.bf16.msra.mxu0 0
      %726 = vmatprep.subr.bf16.mxu0 0
      %727 = vmatpush1.bf16.msra.mxu0 0
      %728 = vmatprep.subr.bf16.mxu0 0
      %729 = vmatpush1.bf16.msra.mxu0 0
      %730 = vmatprep.subr.bf16.mxu0 0
      %731 = vmatpush1.bf16.msra.mxu0 0
      %732 = vmatprep.subr.bf16.mxu0 0
      %733 = vmatpush1.bf16.msra.mxu0 0
      %734 = vmatprep.subr.bf16.mxu0 0
      %735 = vmatpush1.bf16.msra.mxu0 0
      %736 = vmatprep.subr.bf16.mxu0 0
      %737 = vmatpush1.bf16.msra.mxu0 0
      %738 = vmatprep.subr.bf16.mxu0 0
      %739 = vmatpush1.bf16.msra.mxu0 %v722
      %740 = vmatprep.subr.bf16.mxu0 0
      %741 = vmatpush2.bf16.msra.mxu0 0
      %742 = vmatprep.subr.bf16.mxu0 0
      %743 = vmatpush2.bf16.msra.mxu0 0
      %744 = vmatprep.subr.bf16.mxu0 0
      %745 = vmatpush2.bf16.msra.mxu0 0
      %746 = vmatprep.subr.bf16.mxu0 0
      %747 = vmatpush2.bf16.msra.mxu0 0
      %748 = vmatprep.subr.bf16.mxu0 0
      %749 = vmatpush2.bf16.msra.mxu0 0
      %750 = vmatprep.subr.bf16.mxu0 0
      %751 = vmatpush2.bf16.msra.mxu0 0
      %752 = vmatprep.subr.bf16.mxu0 0
      %753 = vmatpush2.bf16.msra.mxu0 0
      %754 = vmatprep.subr.bf16.mxu0 0
      %755 = vmatpush2.bf16.msra.mxu0 0
      %756 = vmatprep.mubr.bf16.mxu0 0
      %757 = vmatmul.mubr.bf16.gmra.mxu0 %v697
      %v758 = vpop.f32.mrf.mxu0
      %v759 = vadd.f32 %v688, %v758
      %v760 = vpop.f32.mrf.mxu0
      %v761 = vpop.f32.mrf.mxu0
      %v762 = vadd.f32 %v688, %v761
      %v763 = vpop.f32.mrf.mxu0
      %764 = vmatprep.mubr.bf16.mxu0 0
      %765 = vmatmul.mubr.bf16.gmra.mxu0 %v700
      %v766 = vpop.f32.mrf.mxu0
      %v767 = vadd.f32 %v688, %v766
      %v768 = vpop.f32.mrf.mxu0
      %v769 = vpop.f32.mrf.mxu0
      %v770 = vadd.f32 %v688, %v769
      %v771 = vpop.f32.mrf.mxu0
      %772 = vmatprep.mubr.bf16.mxu0 0
      %773 = vmatmul.mubr.bf16.gmra.mxu0 %v703
      %v774 = vpop.f32.mrf.mxu0
      %v775 = vadd.f32 %v688, %v774
      %v776 = vpop.f32.mrf.mxu0
      %v777 = vpop.f32.mrf.mxu0
      %v778 = vadd.f32 %v688, %v777
      %v779 = vpop.f32.mrf.mxu0
      %780 = vmatprep.mubr.bf16.mxu0 0
      %781 = vmatmul.mubr.bf16.gmra.mxu0 %v706
      %v782 = vpop.f32.mrf.mxu0
      %v783 = vadd.f32 %v688, %v782
      %v784 = vpop.f32.mrf.mxu0
      %v785 = vpop.f32.mrf.mxu0
      %v786 = vadd.f32 %v688, %v785
      %v787 = vpop.f32.mrf.mxu0
      %788 = vmatprep.mubr.bf16.mxu0 0
      %789 = vmatmul.mubr.bf16.gmra.mxu0 %v709
      %v790 = vpop.f32.mrf.mxu0
      %v791 = vadd.f32 %v688, %v790
      %v792 = vpop.f32.mrf.mxu0
      %v793 = vpop.f32.mrf.mxu0
      %v794 = vadd.f32 %v688, %v793
      %v795 = vpop.f32.mrf.mxu0
      %796 = vmatprep.mubr.bf16.mxu0 0
      %797 = vmatmul.mubr.bf16.gmra.mxu0 %v712
      %v798 = vpop.f32.mrf.mxu0
      %v799 = vadd.f32 %v688, %v798
      %v800 = vpop.f32.mrf.mxu0
      %v801 = vpop.f32.mrf.mxu0
      %v802 = vadd.f32 %v688, %v801
      %v803 = vpop.f32.mrf.mxu0
      %804 = vmatprep.mubr.bf16.mxu0 0
      %805 = vmatmul.mubr.bf16.gmra.mxu0 %v715
      %v806 = vpop.f32.mrf.mxu0
      %v807 = vadd.f32 %v688, %v806
      %v808 = vpop.f32.mrf.mxu0
      %v809 = vpop.f32.mrf.mxu0
      %v810 = vadd.f32 %v688, %v809
      %v811 = vpop.f32.mrf.mxu0
      %812 = vmatprep.mubr.bf16.mxu0 0
      %813 = vmatmul.mubr.bf16.gmra.mxu0 %v718
      %v814 = vpop.f32.mrf.mxu0
      %v815 = vadd.f32 %v688, %v814
      %v816 = vpop.f32.mrf.mxu0
      %v817 = vpop.f32.mrf.mxu0
      %v818 = vadd.f32 %v688, %v817
      %v819 = vpop.f32.mrf.mxu0
      %820 = vdwg.mxu0
      %v821 = vmax.f32 %v759, 0.0
      %v822 = vmax.f32 %v762, 0.0
      %v823 = vmax.f32 %v767, 0.0
      %v824 = vmax.f32 %v770, 0.0
      %v825 = vmax.f32 %v775, 0.0
      %v826 = vmax.f32 %v778, 0.0
      %v827 = vmax.f32 %v783, 0.0
      %v828 = vmax.f32 %v786, 0.0
      %v829 = vmax.f32 %v791, 0.0
      %v830 = vmax.f32 %v794, 0.0
      %v831 = vmax.f32 %v799, 0.0
      %v832 = vmax.f32 %v802, 0.0
      %v833 = vmax.f32 %v807, 0.0
      %v834 = vmax.f32 %v810, 0.0
      %v835 = vmax.f32 %v815, 0.0
      %v836 = vmax.f32 %v818, 0.0
      %v837 = vpack.c.bf16 %v822, %v821
      %v838 = vpack.c.bf16 %v824, %v823
      %v839 = vpack.c.bf16 %v826, %v825
      %v840 = vpack.c.bf16 %v828, %v827
      %v841 = vpack.c.bf16 %v830, %v829
      %v842 = vpack.c.bf16 %v832, %v831
      %v843 = vpack.c.bf16 %v834, %v833
      %v844 = vpack.c.bf16 %v836, %v835
      %v845 = vld [vmem:[%s5] sm:$0xf]
      %v846 = vld [vmem:[%s5 + $0x4] sm:$0xf]
      %v847 = vld [vmem:[%s6] sm:$0x1]
      %v849 = vlaneseq
      %v850 = vshrl.u32 %v849, 7
      %v851 = vsub.s32 0, %v850
      %v852 = vrot.slane %v847, %v851
      %v856 = vunpack.c.l.b16 %v845
      %v857 = vunpack.c.l.b16 %v846
      %v858 = vpack.c.b16 %v857, %v856
      %vm859 = vcmask 121856
      %v861 = vsel %vm859, %v837, 0
      %v864 = vsel %vm859, %v838, 0
      %v867 = vsel %vm859, %v839, 0
      %v870 = vsel %vm859, %v840, 0
      %v873 = vsel %vm859, %v841, 0
      %v876 = vsel %vm859, %v842, 0
      %v879 = vsel %vm859, %v843, 0
      %v882 = vsel %vm859, %v844, 0
      %vm884 = vcmask 1046528
      %vm885 = vcmask 1047552
      %v886 = vsel %vm884, 4294967295, 65535
      %v887 = vsel %vm885, %v886, 0
      %v889 = vand.u32 %v858, %v887
      %891 = vmatprep.subr.bf16.mxu0 0
      %892 = vmatpush1.bf16.msra.mxu0 0
      %893 = vmatprep.subr.bf16.mxu0 0
      %894 = vmatpush1.bf16.msra.mxu0 0
      %895 = vmatprep.subr.bf16.mxu0 0
      %896 = vmatpush1.bf16.msra.mxu0 0
      %897 = vmatprep.subr.bf16.mxu0 0
      %898 = vmatpush1.bf16.msra.mxu0 0
      %899 = vmatprep.subr.bf16.mxu0 0
      %900 = vmatpush1.bf16.msra.mxu0 0
      %901 = vmatprep.subr.bf16.mxu0 0
      %902 = vmatpush1.bf16.msra.mxu0 0
      %903 = vmatprep.subr.bf16.mxu0 0
      %904 = vmatpush1.bf16.msra.mxu0 0
      %905 = vmatprep.subr.bf16.mxu0 0
      %906 = vmatpush1.bf16.msra.mxu0 %v889
      %907 = vmatprep.subr.bf16.mxu0 0
      %908 = vmatpush2.bf16.msra.mxu0 0
      %909 = vmatprep.subr.bf16.mxu0 0
      %910 = vmatpush2.bf16.msra.mxu0 0
      %911 = vmatprep.subr.bf16.mxu0 0
      %912 = vmatpush2.bf16.msra.mxu0 0
      %913 = vmatprep.subr.bf16.mxu0 0
      %914 = vmatpush2.bf16.msra.mxu0 0
      %915 = vmatprep.subr.bf16.mxu0 0
      %916 = vmatpush2.bf16.msra.mxu0 0
      %917 = vmatprep.subr.bf16.mxu0 0
      %918 = vmatpush2.bf16.msra.mxu0 0
      %919 = vmatprep.subr.bf16.mxu0 0
      %920 = vmatpush2.bf16.msra.mxu0 0
      %921 = vmatprep.subr.bf16.mxu0 0
      %922 = vmatpush2.bf16.msra.mxu0 0
      %923 = vmatprep.mubr.bf16.mxu0 0
      %924 = vmatmul.mubr.bf16.gmra.mxu0 %v861
      %v925 = vpop.f32.mrf.mxu0
      %v926 = vadd.f32 %v852, %v925
      %v927 = vpop.f32.mrf.mxu0
      %v928 = vpop.f32.mrf.mxu0
      %v929 = vadd.f32 %v852, %v928
      %v930 = vpop.f32.mrf.mxu0
      %931 = vmatprep.mubr.bf16.mxu0 0
      %932 = vmatmul.mubr.bf16.gmra.mxu0 %v864
      %v933 = vpop.f32.mrf.mxu0
      %v934 = vadd.f32 %v852, %v933
      %v935 = vpop.f32.mrf.mxu0
      %v936 = vpop.f32.mrf.mxu0
      %v937 = vadd.f32 %v852, %v936
      %v938 = vpop.f32.mrf.mxu0
      %939 = vmatprep.mubr.bf16.mxu0 0
      %940 = vmatmul.mubr.bf16.gmra.mxu0 %v867
      %v941 = vpop.f32.mrf.mxu0
      %v942 = vadd.f32 %v852, %v941
      %v943 = vpop.f32.mrf.mxu0
      %v944 = vpop.f32.mrf.mxu0
      %v945 = vadd.f32 %v852, %v944
      %v946 = vpop.f32.mrf.mxu0
      %947 = vmatprep.mubr.bf16.mxu0 0
      %948 = vmatmul.mubr.bf16.gmra.mxu0 %v870
      %v949 = vpop.f32.mrf.mxu0
      %v950 = vadd.f32 %v852, %v949
      %v951 = vpop.f32.mrf.mxu0
      %v952 = vpop.f32.mrf.mxu0
      %v953 = vadd.f32 %v852, %v952
      %v954 = vpop.f32.mrf.mxu0
      %955 = vmatprep.mubr.bf16.mxu0 0
      %956 = vmatmul.mubr.bf16.gmra.mxu0 %v873
      %v957 = vpop.f32.mrf.mxu0
      %v958 = vadd.f32 %v852, %v957
      %v959 = vpop.f32.mrf.mxu0
      %v960 = vpop.f32.mrf.mxu0
      %v961 = vadd.f32 %v852, %v960
      %v962 = vpop.f32.mrf.mxu0
      %963 = vmatprep.mubr.bf16.mxu0 0
      %964 = vmatmul.mubr.bf16.gmra.mxu0 %v876
      %v965 = vpop.f32.mrf.mxu0
      %v966 = vadd.f32 %v852, %v965
      %v967 = vpop.f32.mrf.mxu0
      %v968 = vpop.f32.mrf.mxu0
      %v969 = vadd.f32 %v852, %v968
      %v970 = vpop.f32.mrf.mxu0
      %971 = vmatprep.mubr.bf16.mxu0 0
      %972 = vmatmul.mubr.bf16.gmra.mxu0 %v879
      %v973 = vpop.f32.mrf.mxu0
      %v974 = vadd.f32 %v852, %v973
      %v975 = vpop.f32.mrf.mxu0
      %v976 = vpop.f32.mrf.mxu0
      %v977 = vadd.f32 %v852, %v976
      %v978 = vpop.f32.mrf.mxu0
      %979 = vmatprep.mubr.bf16.mxu0 0
      %980 = vmatmul.mubr.bf16.gmra.mxu0 %v882
      %v981 = vpop.f32.mrf.mxu0
      %v982 = vadd.f32 %v852, %v981
      %v983 = vpop.f32.mrf.mxu0
      %v984 = vpop.f32.mrf.mxu0
      %v985 = vadd.f32 %v852, %v984
      %v986 = vpop.f32.mrf.mxu0
      %987 = vdwg.mxu0
      %v988 = vmax.f32 %v926, 0.0
      %v989 = vmax.f32 %v929, 0.0
      %v990 = vmax.f32 %v934, 0.0
      %v991 = vmax.f32 %v937, 0.0
      %v992 = vmax.f32 %v942, 0.0
      %v993 = vmax.f32 %v945, 0.0
      %v994 = vmax.f32 %v950, 0.0
      %v995 = vmax.f32 %v953, 0.0
      %v996 = vmax.f32 %v958, 0.0
      %v997 = vmax.f32 %v961, 0.0
      %v998 = vmax.f32 %v966, 0.0
      %v999 = vmax.f32 %v969, 0.0
      %v1000 = vmax.f32 %v974, 0.0
      %v1001 = vmax.f32 %v977, 0.0
      %v1002 = vmax.f32 %v982, 0.0
      %v1003 = vmax.f32 %v985, 0.0
      %v1004 = vpack.c.bf16 %v989, %v988
      %v1005 = vpack.c.bf16 %v991, %v990
      %v1006 = vpack.c.bf16 %v993, %v992
      %v1007 = vpack.c.bf16 %v995, %v994
      %v1008 = vpack.c.bf16 %v997, %v996
      %v1009 = vpack.c.bf16 %v999, %v998
      %v1010 = vpack.c.bf16 %v1001, %v1000
      %v1011 = vpack.c.bf16 %v1003, %v1002
      %v1012 = vld [vmem:[%s7] sm:$0xf]
      %v1013 = vld [vmem:[%s7 + $0x4] sm:$0x1]
      %v1014 = vld [vmem:[%s8] sm:$0x1]
      %v1016 = vlaneseq
      %v1017 = vshrl.u32 %v1016, 7
      %v1018 = vsub.s32 0, %v1017
      %v1019 = vrot.slane %v1014, %v1018
      %v1023 = vunpack.c.l.b16 %v1012
      %v1024 = vunpack.c.l.b16 %v1013
      %v1025 = vpack.c.b16 %v1024, %v1023
      %v1027 = vsel %vm695, %v1004, 0
      %v1030 = vsel %vm695, %v1005, 0
      %v1033 = vsel %vm695, %v1006, 0
      %v1036 = vsel %vm695, %v1007, 0
      %v1039 = vsel %vm695, %v1008, 0
      %v1042 = vsel %vm695, %v1009, 0
      %v1045 = vsel %vm695, %v1010, 0
      %v1048 = vsel %vm695, %v1011, 0
      %v1051 = vsel %vm720, %v1025, 0
      %1053 = vmatprep.subr.bf16.mxu0 0
      %1054 = vmatpush1.bf16.msra.mxu0 0
      %1055 = vmatprep.subr.bf16.mxu0 0
      %1056 = vmatpush1.bf16.msra.mxu0 0
      %1057 = vmatprep.subr.bf16.mxu0 0
      %1058 = vmatpush1.bf16.msra.mxu0 0
      %1059 = vmatprep.subr.bf16.mxu0 0
      %1060 = vmatpush1.bf16.msra.mxu0 0
      %1061 = vmatprep.subr.bf16.mxu0 0
      %1062 = vmatpush1.bf16.msra.mxu0 0
      %1063 = vmatprep.subr.bf16.mxu0 0
      %1064 = vmatpush1.bf16.msra.mxu0 0
      %1065 = vmatprep.subr.bf16.mxu0 0
      %1066 = vmatpush1.bf16.msra.mxu0 0
      %1067 = vmatprep.subr.bf16.mxu0 0
      %1068 = vmatpush1.bf16.msra.mxu0 %v1051
      %1069 = vmatprep.subr.bf16.mxu0 0
      %1070 = vmatpush2.bf16.msra.mxu0 0
      %1071 = vmatprep.subr.bf16.mxu0 0
      %1072 = vmatpush2.bf16.msra.mxu0 0
      %1073 = vmatprep.subr.bf16.mxu0 0
      %1074 = vmatpush2.bf16.msra.mxu0 0
      %1075 = vmatprep.subr.bf16.mxu0 0
      %1076 = vmatpush2.bf16.msra.mxu0 0
      %1077 = vmatprep.subr.bf16.mxu0 0
      %1078 = vmatpush2.bf16.msra.mxu0 0
      %1079 = vmatprep.subr.bf16.mxu0 0
      %1080 = vmatpush2.bf16.msra.mxu0 0
      %1081 = vmatprep.subr.bf16.mxu0 0
      %1082 = vmatpush2.bf16.msra.mxu0 0
      %1083 = vmatprep.subr.bf16.mxu0 0
      %1084 = vmatpush2.bf16.msra.mxu0 0
      %1085 = vmatprep.mubr.bf16.mxu0 0
      %1086 = vmatmul.mubr.bf16.gmra.mxu0 %v1027
      %v1087 = vpop.f32.mrf.mxu0
      %v1088 = vadd.f32 %v1019, %v1087
      %v1089 = vpop.f32.mrf.mxu0
      %v1090 = vpop.f32.mrf.mxu0
      %v1091 = vadd.f32 %v1019, %v1090
      %v1092 = vpop.f32.mrf.mxu0
      %1093 = vmatprep.mubr.bf16.mxu0 0
      %1094 = vmatmul.mubr.bf16.gmra.mxu0 %v1030
      %v1095 = vpop.f32.mrf.mxu0
      %v1096 = vadd.f32 %v1019, %v1095
      %v1097 = vpop.f32.mrf.mxu0
      %v1098 = vpop.f32.mrf.mxu0
      %v1099 = vadd.f32 %v1019, %v1098
      %v1100 = vpop.f32.mrf.mxu0
      %1101 = vmatprep.mubr.bf16.mxu0 0
      %1102 = vmatmul.mubr.bf16.gmra.mxu0 %v1033
      %v1103 = vpop.f32.mrf.mxu0
      %v1104 = vadd.f32 %v1019, %v1103
      %v1105 = vpop.f32.mrf.mxu0
      %v1106 = vpop.f32.mrf.mxu0
      %v1107 = vadd.f32 %v1019, %v1106
      %v1108 = vpop.f32.mrf.mxu0
      %1109 = vmatprep.mubr.bf16.mxu0 0
      %1110 = vmatmul.mubr.bf16.gmra.mxu0 %v1036
      %v1111 = vpop.f32.mrf.mxu0
      %v1112 = vadd.f32 %v1019, %v1111
      %v1113 = vpop.f32.mrf.mxu0
      %v1114 = vpop.f32.mrf.mxu0
      %v1115 = vadd.f32 %v1019, %v1114
      %v1116 = vpop.f32.mrf.mxu0
      %1117 = vmatprep.mubr.bf16.mxu0 0
      %1118 = vmatmul.mubr.bf16.gmra.mxu0 %v1039
      %v1119 = vpop.f32.mrf.mxu0
      %v1120 = vadd.f32 %v1019, %v1119
      %v1121 = vpop.f32.mrf.mxu0
      %v1122 = vpop.f32.mrf.mxu0
      %v1123 = vadd.f32 %v1019, %v1122
      %v1124 = vpop.f32.mrf.mxu0
      %1125 = vmatprep.mubr.bf16.mxu0 0
      %1126 = vmatmul.mubr.bf16.gmra.mxu0 %v1042
      %v1127 = vpop.f32.mrf.mxu0
      %v1128 = vadd.f32 %v1019, %v1127
      %v1129 = vpop.f32.mrf.mxu0
      %v1130 = vpop.f32.mrf.mxu0
      %v1131 = vadd.f32 %v1019, %v1130
      %v1132 = vpop.f32.mrf.mxu0
      %1133 = vmatprep.mubr.bf16.mxu0 0
      %1134 = vmatmul.mubr.bf16.gmra.mxu0 %v1045
      %v1135 = vpop.f32.mrf.mxu0
      %v1136 = vadd.f32 %v1019, %v1135
      %v1137 = vpop.f32.mrf.mxu0
      %v1138 = vpop.f32.mrf.mxu0
      %v1139 = vadd.f32 %v1019, %v1138
      %v1140 = vpop.f32.mrf.mxu0
      %1141 = vmatprep.mubr.bf16.mxu0 0
      %1142 = vmatmul.mubr.bf16.gmra.mxu0 %v1048
      %v1143 = vpop.f32.mrf.mxu0
      %v1144 = vadd.f32 %v1019, %v1143
      %v1145 = vpop.f32.mrf.mxu0
      %v1146 = vpop.f32.mrf.mxu0
      %v1147 = vadd.f32 %v1019, %v1146
      %v1148 = vpop.f32.mrf.mxu0
      %1149 = vdwg.mxu0
      %v1150 = vmax.f32 %v1088, 0.0
      %v1151 = vmax.f32 %v1091, 0.0
      %v1152 = vmax.f32 %v1096, 0.0
      %v1153 = vmax.f32 %v1099, 0.0
      %v1154 = vmax.f32 %v1104, 0.0
      %v1155 = vmax.f32 %v1107, 0.0
      %v1156 = vmax.f32 %v1112, 0.0
      %v1157 = vmax.f32 %v1115, 0.0
      %v1158 = vmax.f32 %v1120, 0.0
      %v1159 = vmax.f32 %v1123, 0.0
      %v1160 = vmax.f32 %v1128, 0.0
      %v1161 = vmax.f32 %v1131, 0.0
      %v1162 = vmax.f32 %v1136, 0.0
      %v1163 = vmax.f32 %v1139, 0.0
      %v1164 = vmax.f32 %v1144, 0.0
      %v1165 = vmax.f32 %v1147, 0.0
      %v1166 = vpack.c.bf16 %v1151, %v1150
      %v1167 = vpack.c.bf16 %v1153, %v1152
      %v1168 = vpack.c.bf16 %v1155, %v1154
      %v1169 = vpack.c.bf16 %v1157, %v1156
      %v1170 = vpack.c.bf16 %v1159, %v1158
      %v1171 = vpack.c.bf16 %v1161, %v1160
      %v1172 = vpack.c.bf16 %v1163, %v1162
      %v1173 = vpack.c.bf16 %v1165, %v1164
      %v1174 = vld [vmem:[%s9] sm:$0xf]
      %v1175 = vld [vmem:[%s9 + $0x4] sm:$0xf]
      %v1176 = vld [vmem:[%s10] sm:$0x1]
      %v1178 = vlaneseq
      %v1179 = vshrl.u32 %v1178, 7
      %v1180 = vsub.s32 0, %v1179
      %v1181 = vrot.slane %v1176, %v1180
      %v1185 = vunpack.c.l.b16 %v1174
      %v1186 = vunpack.c.l.b16 %v1175
      %v1187 = vpack.c.b16 %v1186, %v1185
      %v1189 = vsel %vm859, %v1166, 0
      %v1192 = vsel %vm859, %v1167, 0
      %v1195 = vsel %vm859, %v1168, 0
      %v1198 = vsel %vm859, %v1169, 0
      %v1201 = vsel %vm859, %v1170, 0
      %v1204 = vsel %vm859, %v1171, 0
      %v1207 = vsel %vm859, %v1172, 0
      %v1210 = vsel %vm859, %v1173, 0
      %v1213 = vand.u32 %v1187, %v887
      %1215 = vmatprep.subr.bf16.mxu0 0
      %1216 = vmatpush1.bf16.msra.mxu0 0
      %1217 = vmatprep.subr.bf16.mxu0 0
      %1218 = vmatpush1.bf16.msra.mxu0 0
      %1219 = vmatprep.subr.bf16.mxu0 0
      %1220 = vmatpush1.bf16.msra.mxu0 0
      %1221 = vmatprep.subr.bf16.mxu0 0
      %1222 = vmatpush1.bf16.msra.mxu0 0
      %1223 = vmatprep.subr.bf16.mxu0 0
      %1224 = vmatpush1.bf16.msra.mxu0 0
      %1225 = vmatprep.subr.bf16.mxu0 0
      %1226 = vmatpush1.bf16.msra.mxu0 0
      %1227 = vmatprep.subr.bf16.mxu0 0
      %1228 = vmatpush1.bf16.msra.mxu0 0
      %1229 = vmatprep.subr.bf16.mxu0 0
      %1230 = vmatpush1.bf16.msra.mxu0 %v1213
      %1231 = vmatprep.subr.bf16.mxu0 0
      %1232 = vmatpush2.bf16.msra.mxu0 0
      %1233 = vmatprep.subr.bf16.mxu0 0
      %1234 = vmatpush2.bf16.msra.mxu0 0
      %1235 = vmatprep.subr.bf16.mxu0 0
      %1236 = vmatpush2.bf16.msra.mxu0 0
      %1237 = vmatprep.subr.bf16.mxu0 0
      %1238 = vmatpush2.bf16.msra.mxu0 0
      %1239 = vmatprep.subr.bf16.mxu0 0
      %1240 = vmatpush2.bf16.msra.mxu0 0
      %1241 = vmatprep.subr.bf16.mxu0 0
      %1242 = vmatpush2.bf16.msra.mxu0 0
      %1243 = vmatprep.subr.bf16.mxu0 0
      %1244 = vmatpush2.bf16.msra.mxu0 0
      %1245 = vmatprep.subr.bf16.mxu0 0
      %1246 = vmatpush2.bf16.msra.mxu0 0
      %1247 = vmatprep.mubr.bf16.mxu0 0
      %1248 = vmatmul.mubr.bf16.gmra.mxu0 %v1189
      %v1249 = vpop.f32.mrf.mxu0
      %v1250 = vadd.f32 %v1181, %v1249
      %v1251 = vpop.f32.mrf.mxu0
      %v1252 = vpop.f32.mrf.mxu0
      %v1253 = vadd.f32 %v1181, %v1252
      %v1254 = vpop.f32.mrf.mxu0
      %1255 = vmatprep.mubr.bf16.mxu0 0
      %1256 = vmatmul.mubr.bf16.gmra.mxu0 %v1192
      %v1257 = vpop.f32.mrf.mxu0
      %v1258 = vadd.f32 %v1181, %v1257
      %v1259 = vpop.f32.mrf.mxu0
      %v1260 = vpop.f32.mrf.mxu0
      %v1261 = vadd.f32 %v1181, %v1260
      %v1262 = vpop.f32.mrf.mxu0
      %1263 = vmatprep.mubr.bf16.mxu0 0
      %1264 = vmatmul.mubr.bf16.gmra.mxu0 %v1195
      %v1265 = vpop.f32.mrf.mxu0
      %v1266 = vadd.f32 %v1181, %v1265
      %v1267 = vpop.f32.mrf.mxu0
      %v1268 = vpop.f32.mrf.mxu0
      %v1269 = vadd.f32 %v1181, %v1268
      %v1270 = vpop.f32.mrf.mxu0
      %1271 = vmatprep.mubr.bf16.mxu0 0
      %1272 = vmatmul.mubr.bf16.gmra.mxu0 %v1198
      %v1273 = vpop.f32.mrf.mxu0
      %v1274 = vadd.f32 %v1181, %v1273
      %v1275 = vpop.f32.mrf.mxu0
      %v1276 = vpop.f32.mrf.mxu0
      %v1277 = vadd.f32 %v1181, %v1276
      %v1278 = vpop.f32.mrf.mxu0
      %1279 = vmatprep.mubr.bf16.mxu0 0
      %1280 = vmatmul.mubr.bf16.gmra.mxu0 %v1201
      %v1281 = vpop.f32.mrf.mxu0
      %v1282 = vadd.f32 %v1181, %v1281
      %v1283 = vpop.f32.mrf.mxu0
      %v1284 = vpop.f32.mrf.mxu0
      %v1285 = vadd.f32 %v1181, %v1284
      %v1286 = vpop.f32.mrf.mxu0
      %1287 = vmatprep.mubr.bf16.mxu0 0
      %1288 = vmatmul.mubr.bf16.gmra.mxu0 %v1204
      %v1289 = vpop.f32.mrf.mxu0
      %v1290 = vadd.f32 %v1181, %v1289
      %v1291 = vpop.f32.mrf.mxu0
      %v1292 = vpop.f32.mrf.mxu0
      %v1293 = vadd.f32 %v1181, %v1292
      %v1294 = vpop.f32.mrf.mxu0
      %1295 = vmatprep.mubr.bf16.mxu0 0
      %1296 = vmatmul.mubr.bf16.gmra.mxu0 %v1207
      %v1297 = vpop.f32.mrf.mxu0
      %v1298 = vadd.f32 %v1181, %v1297
      %v1299 = vpop.f32.mrf.mxu0
      %v1300 = vpop.f32.mrf.mxu0
      %v1301 = vadd.f32 %v1181, %v1300
      %v1302 = vpop.f32.mrf.mxu0
      %1303 = vmatprep.mubr.bf16.mxu0 0
      %1304 = vmatmul.mubr.bf16.gmra.mxu0 %v1210
      %v1305 = vpop.f32.mrf.mxu0
      %v1306 = vadd.f32 %v1181, %v1305
      %v1307 = vpop.f32.mrf.mxu0
      %v1308 = vpop.f32.mrf.mxu0
      %v1309 = vadd.f32 %v1181, %v1308
      %v1310 = vpop.f32.mrf.mxu0
      %1311 = vdwg.mxu0
      %v1312 = vmax.f32 %v1250, 0.0
      %v1313 = vmax.f32 %v1253, 0.0
      %v1314 = vmax.f32 %v1258, 0.0
      %v1315 = vmax.f32 %v1261, 0.0
      %v1316 = vmax.f32 %v1266, 0.0
      %v1317 = vmax.f32 %v1269, 0.0
      %v1318 = vmax.f32 %v1274, 0.0
      %v1319 = vmax.f32 %v1277, 0.0
      %v1320 = vmax.f32 %v1282, 0.0
      %v1321 = vmax.f32 %v1285, 0.0
      %v1322 = vmax.f32 %v1290, 0.0
      %v1323 = vmax.f32 %v1293, 0.0
      %v1324 = vmax.f32 %v1298, 0.0
      %v1325 = vmax.f32 %v1301, 0.0
      %v1326 = vmax.f32 %v1306, 0.0
      %v1327 = vmax.f32 %v1309, 0.0
      %v1328 = vpack.c.bf16 %v1313, %v1312
      %v1329 = vpack.c.bf16 %v1315, %v1314
      %v1330 = vpack.c.bf16 %v1317, %v1316
      %v1331 = vpack.c.bf16 %v1319, %v1318
      %v1332 = vpack.c.bf16 %v1321, %v1320
      %v1333 = vpack.c.bf16 %v1323, %v1322
      %v1334 = vpack.c.bf16 %v1325, %v1324
      %v1335 = vpack.c.bf16 %v1327, %v1326
      %v1336 = vld [vmem:[%s11] sm:$0xf]
      %v1337 = vld [vmem:[%s11 + $0x4] sm:$0x1]
      %v1338 = vld [vmem:[%s12] sm:$0x1]
      %v1340 = vlaneseq
      %v1341 = vshrl.u32 %v1340, 7
      %v1342 = vsub.s32 0, %v1341
      %v1343 = vrot.slane %v1338, %v1342
      %1353 = vrot.lane.b32.xlu0 %v1004, 118
      %v1354 = vpop.permute.xlu0 %1353
      %1355 = vrot.lane.b32.xlu0 %v1005, 118
      %v1356 = vpop.permute.xlu0 %1355
      %1357 = vrot.lane.b32.xlu0 %v1006, 118
      %v1358 = vpop.permute.xlu0 %1357
      %1359 = vrot.lane.b32.xlu0 %v1007, 118
      %v1360 = vpop.permute.xlu0 %1359
      %1361 = vrot.lane.b32.xlu0 %v1008, 118
      %v1362 = vpop.permute.xlu0 %1361
      %1363 = vrot.lane.b32.xlu0 %v1009, 118
      %v1364 = vpop.permute.xlu0 %1363
      %1365 = vrot.lane.b32.xlu0 %v1010, 118
      %v1366 = vpop.permute.xlu0 %1365
      %1367 = vrot.lane.b32.xlu0 %v1011, 118
      %v1368 = vpop.permute.xlu0 %1367
      %v1371 = vunpack.c.l.b16 %v1336
      %v1372 = vunpack.c.l.b16 %v1337
      %v1373 = vpack.c.b16 %v1372, %v1371
      %v1375 = vsel %vm695, %v1354, 0
      %v1378 = vsel %vm695, %v1356, 0
      %v1381 = vsel %vm695, %v1358, 0
      %v1384 = vsel %vm695, %v1360, 0
      %v1387 = vsel %vm695, %v1362, 0
      %v1390 = vsel %vm695, %v1364, 0
      %v1393 = vsel %vm695, %v1366, 0
      %v1396 = vsel %vm695, %v1368, 0
      %v1399 = vsel %vm720, %v1373, 0
      %1401 = vmatprep.subr.bf16.mxu0 0
      %1402 = vmatpush1.bf16.msra.mxu0 0
      %1403 = vmatprep.subr.bf16.mxu0 0
      %1404 = vmatpush1.bf16.msra.mxu0 0
      %1405 = vmatprep.subr.bf16.mxu0 0
      %1406 = vmatpush1.bf16.msra.mxu0 0
      %1407 = vmatprep.subr.bf16.mxu0 0
      %1408 = vmatpush1.bf16.msra.mxu0 0
      %1409 = vmatprep.subr.bf16.mxu0 0
      %1410 = vmatpush1.bf16.msra.mxu0 0
      %1411 = vmatprep.subr.bf16.mxu0 0
      %1412 = vmatpush1.bf16.msra.mxu0 0
      %1413 = vmatprep.subr.bf16.mxu0 0
      %1414 = vmatpush1.bf16.msra.mxu0 0
      %1415 = vmatprep.subr.bf16.mxu0 0
      %1416 = vmatpush1.bf16.msra.mxu0 %v1399
      %1417 = vmatprep.subr.bf16.mxu0 0
      %1418 = vmatpush2.bf16.msra.mxu0 0
      %1419 = vmatprep.subr.bf16.mxu0 0
      %1420 = vmatpush2.bf16.msra.mxu0 0
      %1421 = vmatprep.subr.bf16.mxu0 0
      %1422 = vmatpush2.bf16.msra.mxu0 0
      %1423 = vmatprep.subr.bf16.mxu0 0
      %1424 = vmatpush2.bf16.msra.mxu0 0
      %1425 = vmatprep.subr.bf16.mxu0 0
      %1426 = vmatpush2.bf16.msra.mxu0 0
      %1427 = vmatprep.subr.bf16.mxu0 0
      %1428 = vmatpush2.bf16.msra.mxu0 0
      %1429 = vmatprep.subr.bf16.mxu0 0
      %1430 = vmatpush2.bf16.msra.mxu0 0
      %1431 = vmatprep.subr.bf16.mxu0 0
      %1432 = vmatpush2.bf16.msra.mxu0 0
      %1433 = vmatprep.mubr.bf16.mxu0 0
      %1434 = vmatmul.mubr.bf16.gmra.mxu0 %v1375
      %v1435 = vpop.f32.mrf.mxu0
      %v1436 = vadd.f32 %v1343, %v1435
      %v1437 = vpop.f32.mrf.mxu0
      %v1438 = vpop.f32.mrf.mxu0
      %v1439 = vadd.f32 %v1343, %v1438
      %v1440 = vpop.f32.mrf.mxu0
      %1441 = vmatprep.mubr.bf16.mxu0 0
      %1442 = vmatmul.mubr.bf16.gmra.mxu0 %v1378
      %v1443 = vpop.f32.mrf.mxu0
      %v1444 = vadd.f32 %v1343, %v1443
      %v1445 = vpop.f32.mrf.mxu0
      %v1446 = vpop.f32.mrf.mxu0
      %v1447 = vadd.f32 %v1343, %v1446
      %v1448 = vpop.f32.mrf.mxu0
      %1449 = vmatprep.mubr.bf16.mxu0 0
      %1450 = vmatmul.mubr.bf16.gmra.mxu0 %v1381
      %v1451 = vpop.f32.mrf.mxu0
      %v1452 = vadd.f32 %v1343, %v1451
      %v1453 = vpop.f32.mrf.mxu0
      %v1454 = vpop.f32.mrf.mxu0
      %v1455 = vadd.f32 %v1343, %v1454
      %v1456 = vpop.f32.mrf.mxu0
      %1457 = vmatprep.mubr.bf16.mxu0 0
      %1458 = vmatmul.mubr.bf16.gmra.mxu0 %v1384
      %v1459 = vpop.f32.mrf.mxu0
      %v1460 = vadd.f32 %v1343, %v1459
      %v1461 = vpop.f32.mrf.mxu0
      %v1462 = vpop.f32.mrf.mxu0
      %v1463 = vadd.f32 %v1343, %v1462
      %v1464 = vpop.f32.mrf.mxu0
      %1465 = vmatprep.mubr.bf16.mxu0 0
      %1466 = vmatmul.mubr.bf16.gmra.mxu0 %v1387
      %v1467 = vpop.f32.mrf.mxu0
      %v1468 = vadd.f32 %v1343, %v1467
      %v1469 = vpop.f32.mrf.mxu0
      %v1470 = vpop.f32.mrf.mxu0
      %v1471 = vadd.f32 %v1343, %v1470
      %v1472 = vpop.f32.mrf.mxu0
      %1473 = vmatprep.mubr.bf16.mxu0 0
      %1474 = vmatmul.mubr.bf16.gmra.mxu0 %v1390
      %v1475 = vpop.f32.mrf.mxu0
      %v1476 = vadd.f32 %v1343, %v1475
      %v1477 = vpop.f32.mrf.mxu0
      %v1478 = vpop.f32.mrf.mxu0
      %v1479 = vadd.f32 %v1343, %v1478
      %v1480 = vpop.f32.mrf.mxu0
      %1481 = vmatprep.mubr.bf16.mxu0 0
      %1482 = vmatmul.mubr.bf16.gmra.mxu0 %v1393
      %v1483 = vpop.f32.mrf.mxu0
      %v1484 = vadd.f32 %v1343, %v1483
      %v1485 = vpop.f32.mrf.mxu0
      %v1486 = vpop.f32.mrf.mxu0
      %v1487 = vadd.f32 %v1343, %v1486
      %v1488 = vpop.f32.mrf.mxu0
      %1489 = vmatprep.mubr.bf16.mxu0 0
      %1490 = vmatmul.mubr.bf16.gmra.mxu0 %v1396
      %v1491 = vpop.f32.mrf.mxu0
      %v1492 = vadd.f32 %v1343, %v1491
      %v1493 = vpop.f32.mrf.mxu0
      %v1494 = vpop.f32.mrf.mxu0
      %v1495 = vadd.f32 %v1343, %v1494
      %v1496 = vpop.f32.mrf.mxu0
      %1497 = vdwg.mxu0
      %v1498 = vmax.f32 %v1436, 0.0
      %v1499 = vmax.f32 %v1439, 0.0
      %v1500 = vmax.f32 %v1444, 0.0
      %v1501 = vmax.f32 %v1447, 0.0
      %v1502 = vmax.f32 %v1452, 0.0
      %v1503 = vmax.f32 %v1455, 0.0
      %v1504 = vmax.f32 %v1460, 0.0
      %v1505 = vmax.f32 %v1463, 0.0
      %v1506 = vmax.f32 %v1468, 0.0
      %v1507 = vmax.f32 %v1471, 0.0
      %v1508 = vmax.f32 %v1476, 0.0
      %v1509 = vmax.f32 %v1479, 0.0
      %v1510 = vmax.f32 %v1484, 0.0
      %v1511 = vmax.f32 %v1487, 0.0
      %v1512 = vmax.f32 %v1492, 0.0
      %v1513 = vmax.f32 %v1495, 0.0
      %v1514 = vld [vmem:[%s13] sm:$0xf]
      %v1515 = vld [vmem:[%s13 + $0x4] sm:$0x1]
      %v1516 = vld [vmem:[%s14] sm:$0x1]
      %v1518 = vlaneseq
      %v1519 = vshrl.u32 %v1518, 7
      %v1520 = vsub.s32 0, %v1519
      %v1521 = vrot.slane %v1516, %v1520
      %1531 = vrot.lane.b32.xlu0 %v1328, 124
      %v1532 = vpop.permute.xlu0 %1531
      %1533 = vrot.lane.b32.xlu0 %v1329, 124
      %v1534 = vpop.permute.xlu0 %1533
      %1535 = vrot.lane.b32.xlu0 %v1330, 124
      %v1536 = vpop.permute.xlu0 %1535
      %1537 = vrot.lane.b32.xlu0 %v1331, 124
      %v1538 = vpop.permute.xlu0 %1537
      %1539 = vrot.lane.b32.xlu0 %v1332, 124
      %v1540 = vpop.permute.xlu0 %1539
      %1541 = vrot.lane.b32.xlu0 %v1333, 124
      %v1542 = vpop.permute.xlu0 %1541
      %1543 = vrot.lane.b32.xlu0 %v1334, 124
      %v1544 = vpop.permute.xlu0 %1543
      %1545 = vrot.lane.b32.xlu0 %v1335, 124
      %v1546 = vpop.permute.xlu0 %1545
      %v1549 = vunpack.c.l.b16 %v1514
      %v1550 = vunpack.c.l.b16 %v1515
      %v1551 = vpack.c.b16 %v1550, %v1549
      %v1553 = vsel %vm695, %v1532, 0
      %v1556 = vsel %vm695, %v1534, 0
      %v1559 = vsel %vm695, %v1536, 0
      %v1562 = vsel %vm695, %v1538, 0
      %v1565 = vsel %vm695, %v1540, 0
      %v1568 = vsel %vm695, %v1542, 0
      %v1571 = vsel %vm695, %v1544, 0
      %v1574 = vsel %vm695, %v1546, 0
      %v1577 = vsel %vm720, %v1551, 0
      %1579 = vmatprep.subr.bf16.mxu0 0
      %1580 = vmatpush1.bf16.msra.mxu0 0
      %1581 = vmatprep.subr.bf16.mxu0 0
      %1582 = vmatpush1.bf16.msra.mxu0 0
      %1583 = vmatprep.subr.bf16.mxu0 0
      %1584 = vmatpush1.bf16.msra.mxu0 0
      %1585 = vmatprep.subr.bf16.mxu0 0
      %1586 = vmatpush1.bf16.msra.mxu0 0
      %1587 = vmatprep.subr.bf16.mxu0 0
      %1588 = vmatpush1.bf16.msra.mxu0 0
      %1589 = vmatprep.subr.bf16.mxu0 0
      %1590 = vmatpush1.bf16.msra.mxu0 0
      %1591 = vmatprep.subr.bf16.mxu0 0
      %1592 = vmatpush1.bf16.msra.mxu0 0
      %1593 = vmatprep.subr.bf16.mxu0 0
      %1594 = vmatpush1.bf16.msra.mxu0 %v1577
      %1595 = vmatprep.subr.bf16.mxu0 0
      %1596 = vmatpush2.bf16.msra.mxu0 0
      %1597 = vmatprep.subr.bf16.mxu0 0
      %1598 = vmatpush2.bf16.msra.mxu0 0
      %1599 = vmatprep.subr.bf16.mxu0 0
      %1600 = vmatpush2.bf16.msra.mxu0 0
      %1601 = vmatprep.subr.bf16.mxu0 0
      %1602 = vmatpush2.bf16.msra.mxu0 0
      %1603 = vmatprep.subr.bf16.mxu0 0
      %1604 = vmatpush2.bf16.msra.mxu0 0
      %1605 = vmatprep.subr.bf16.mxu0 0
      %1606 = vmatpush2.bf16.msra.mxu0 0
      %1607 = vmatprep.subr.bf16.mxu0 0
      %1608 = vmatpush2.bf16.msra.mxu0 0
      %1609 = vmatprep.subr.bf16.mxu0 0
      %1610 = vmatpush2.bf16.msra.mxu0 0
      %1611 = vmatprep.mubr.bf16.mxu0 0
      %1612 = vmatmul.mubr.bf16.gmra.mxu0 %v1553
      %v1613 = vpop.f32.mrf.mxu0
      %v1614 = vadd.f32 %v1521, %v1613
      %v1615 = vpop.f32.mrf.mxu0
      %v1616 = vpop.f32.mrf.mxu0
      %v1617 = vadd.f32 %v1521, %v1616
      %v1618 = vpop.f32.mrf.mxu0
      %1619 = vmatprep.mubr.bf16.mxu0 0
      %1620 = vmatmul.mubr.bf16.gmra.mxu0 %v1556
      %v1621 = vpop.f32.mrf.mxu0
      %v1622 = vadd.f32 %v1521, %v1621
      %v1623 = vpop.f32.mrf.mxu0
      %v1624 = vpop.f32.mrf.mxu0
      %v1625 = vadd.f32 %v1521, %v1624
      %v1626 = vpop.f32.mrf.mxu0
      %1627 = vmatprep.mubr.bf16.mxu0 0
      %1628 = vmatmul.mubr.bf16.gmra.mxu0 %v1559
      %v1629 = vpop.f32.mrf.mxu0
      %v1630 = vadd.f32 %v1521, %v1629
      %v1631 = vpop.f32.mrf.mxu0
      %v1632 = vpop.f32.mrf.mxu0
      %v1633 = vadd.f32 %v1521, %v1632
      %v1634 = vpop.f32.mrf.mxu0
      %1635 = vmatprep.mubr.bf16.mxu0 0
      %1636 = vmatmul.mubr.bf16.gmra.mxu0 %v1562
      %v1637 = vpop.f32.mrf.mxu0
      %v1638 = vadd.f32 %v1521, %v1637
      %v1639 = vpop.f32.mrf.mxu0
      %v1640 = vpop.f32.mrf.mxu0
      %v1641 = vadd.f32 %v1521, %v1640
      %v1642 = vpop.f32.mrf.mxu0
      %1643 = vmatprep.mubr.bf16.mxu0 0
      %1644 = vmatmul.mubr.bf16.gmra.mxu0 %v1565
      %v1645 = vpop.f32.mrf.mxu0
      %v1646 = vadd.f32 %v1521, %v1645
      %v1647 = vpop.f32.mrf.mxu0
      %v1648 = vpop.f32.mrf.mxu0
      %v1649 = vadd.f32 %v1521, %v1648
      %v1650 = vpop.f32.mrf.mxu0
      %1651 = vmatprep.mubr.bf16.mxu0 0
      %1652 = vmatmul.mubr.bf16.gmra.mxu0 %v1568
      %v1653 = vpop.f32.mrf.mxu0
      %v1654 = vadd.f32 %v1521, %v1653
      %v1655 = vpop.f32.mrf.mxu0
      %v1656 = vpop.f32.mrf.mxu0
      %v1657 = vadd.f32 %v1521, %v1656
      %v1658 = vpop.f32.mrf.mxu0
      %1659 = vmatprep.mubr.bf16.mxu0 0
      %1660 = vmatmul.mubr.bf16.gmra.mxu0 %v1571
      %v1661 = vpop.f32.mrf.mxu0
      %v1662 = vadd.f32 %v1521, %v1661
      %v1663 = vpop.f32.mrf.mxu0
      %v1664 = vpop.f32.mrf.mxu0
      %v1665 = vadd.f32 %v1521, %v1664
      %v1666 = vpop.f32.mrf.mxu0
      %1667 = vmatprep.mubr.bf16.mxu0 0
      %1668 = vmatmul.mubr.bf16.gmra.mxu0 %v1574
      %v1669 = vpop.f32.mrf.mxu0
      %v1670 = vadd.f32 %v1521, %v1669
      %v1671 = vpop.f32.mrf.mxu0
      %v1672 = vpop.f32.mrf.mxu0
      %v1673 = vadd.f32 %v1521, %v1672
      %v1674 = vpop.f32.mrf.mxu0
      %1675 = vdwg.mxu0
      %v1676 = vmax.f32 %v1614, 0.0
      %v1677 = vmax.f32 %v1617, 0.0
      %v1678 = vmax.f32 %v1622, 0.0
      %v1679 = vmax.f32 %v1625, 0.0
      %v1680 = vmax.f32 %v1630, 0.0
      %v1681 = vmax.f32 %v1633, 0.0
      %v1682 = vmax.f32 %v1638, 0.0
      %v1683 = vmax.f32 %v1641, 0.0
      %v1684 = vmax.f32 %v1646, 0.0
      %v1685 = vmax.f32 %v1649, 0.0
      %v1686 = vmax.f32 %v1654, 0.0
      %v1687 = vmax.f32 %v1657, 0.0
      %v1688 = vmax.f32 %v1662, 0.0
      %v1689 = vmax.f32 %v1665, 0.0
      %v1690 = vmax.f32 %v1670, 0.0
      %v1691 = vmax.f32 %v1673, 0.0
      %1708 = vrot.lane.b32.xlu0 %v1676, 16
      %v1709 = vpop.permute.xlu0 %1708
      %1710 = vrot.lane.b32.xlu0 %v1677, 16
      %v1711 = vpop.permute.xlu0 %1710
      %1712 = vrot.lane.b32.xlu0 %v1678, 16
      %v1713 = vpop.permute.xlu0 %1712
      %1714 = vrot.lane.b32.xlu0 %v1679, 16
      %v1715 = vpop.permute.xlu0 %1714
      %1716 = vrot.lane.b32.xlu0 %v1680, 16
      %v1717 = vpop.permute.xlu0 %1716
      %1718 = vrot.lane.b32.xlu0 %v1681, 16
      %v1719 = vpop.permute.xlu0 %1718
      %1720 = vrot.lane.b32.xlu0 %v1682, 16
      %v1721 = vpop.permute.xlu0 %1720
      %1722 = vrot.lane.b32.xlu0 %v1683, 16
      %v1723 = vpop.permute.xlu0 %1722
      %1724 = vrot.lane.b32.xlu0 %v1684, 16
      %v1725 = vpop.permute.xlu0 %1724
      %1726 = vrot.lane.b32.xlu0 %v1685, 16
      %v1727 = vpop.permute.xlu0 %1726
      %1728 = vrot.lane.b32.xlu0 %v1686, 16
      %v1729 = vpop.permute.xlu0 %1728
      %1730 = vrot.lane.b32.xlu0 %v1687, 16
      %v1731 = vpop.permute.xlu0 %1730
      %1732 = vrot.lane.b32.xlu0 %v1688, 16
      %v1733 = vpop.permute.xlu0 %1732
      %1734 = vrot.lane.b32.xlu0 %v1689, 16
      %v1735 = vpop.permute.xlu0 %1734
      %1736 = vrot.lane.b32.xlu0 %v1690, 16
      %v1737 = vpop.permute.xlu0 %1736
      %1738 = vrot.lane.b32.xlu0 %v1691, 16
      %v1739 = vpop.permute.xlu0 %1738
      %1772 = vrot.lane.b32.xlu0 %v1250, 48
      %v1773 = vpop.permute.xlu0 %1772
      %1774 = vrot.lane.b32.xlu0 %v1253, 48
      %v1775 = vpop.permute.xlu0 %1774
      %1776 = vrot.lane.b32.xlu0 %v1258, 48
      %v1777 = vpop.permute.xlu0 %1776
      %1778 = vrot.lane.b32.xlu0 %v1261, 48
      %v1779 = vpop.permute.xlu0 %1778
      %1780 = vrot.lane.b32.xlu0 %v1266, 48
      %v1781 = vpop.permute.xlu0 %1780
      %1782 = vrot.lane.b32.xlu0 %v1269, 48
      %v1783 = vpop.permute.xlu0 %1782
      %1784 = vrot.lane.b32.xlu0 %v1274, 48
      %v1785 = vpop.permute.xlu0 %1784
      %1786 = vrot.lane.b32.xlu0 %v1277, 48
      %v1787 = vpop.permute.xlu0 %1786
      %1788 = vrot.lane.b32.xlu0 %v1282, 48
      %v1789 = vpop.permute.xlu0 %1788
      %1790 = vrot.lane.b32.xlu0 %v1285, 48
      %v1791 = vpop.permute.xlu0 %1790
      %1792 = vrot.lane.b32.xlu0 %v1290, 48
      %v1793 = vpop.permute.xlu0 %1792
      %1794 = vrot.lane.b32.xlu0 %v1293, 48
      %v1795 = vpop.permute.xlu0 %1794
      %1796 = vrot.lane.b32.xlu0 %v1298, 48
      %v1797 = vpop.permute.xlu0 %1796
      %1798 = vrot.lane.b32.xlu0 %v1301, 48
      %v1799 = vpop.permute.xlu0 %1798
      %1800 = vrot.lane.b32.xlu0 %v1306, 48
      %v1801 = vpop.permute.xlu0 %1800
      %1802 = vrot.lane.b32.xlu0 %v1309, 48
      %v1803 = vpop.permute.xlu0 %1802
      %vm1820 = vcmask 130048
      %v1821 = vsel %vm1820, %v1498, %v1709
      %v1822 = vsel %vm1820, %v1499, %v1711
      %v1823 = vsel %vm1820, %v1500, %v1713
      %v1824 = vsel %vm1820, %v1501, %v1715
      %v1825 = vsel %vm1820, %v1502, %v1717
      %v1826 = vsel %vm1820, %v1503, %v1719
      %v1827 = vsel %vm1820, %v1504, %v1721
      %v1828 = vsel %vm1820, %v1505, %v1723
      %v1829 = vsel %vm1820, %v1506, %v1725
      %v1830 = vsel %vm1820, %v1507, %v1727
      %v1831 = vsel %vm1820, %v1508, %v1729
      %v1832 = vsel %vm1820, %v1509, %v1731
      %v1833 = vsel %vm1820, %v1510, %v1733
      %v1834 = vsel %vm1820, %v1511, %v1735
      %v1835 = vsel %vm1820, %v1512, %v1737
      %v1836 = vsel %vm1820, %v1513, %v1739
      %vm1837 = vcmask 392192
      %v1838 = vsel %vm1837, %v1821, %v1773
      %v1839 = vsel %vm1837, %v1822, %v1775
      %v1840 = vsel %vm1837, %v1823, %v1777
      %v1841 = vsel %vm1837, %v1824, %v1779
      %v1842 = vsel %vm1837, %v1825, %v1781
      %v1843 = vsel %vm1837, %v1826, %v1783
      %v1844 = vsel %vm1837, %v1827, %v1785
      %v1845 = vsel %vm1837, %v1828, %v1787
      %v1846 = vsel %vm1837, %v1829, %v1789
      %v1847 = vsel %vm1837, %v1830, %v1791
      %v1848 = vsel %vm1837, %v1831, %v1793
      %v1849 = vsel %vm1837, %v1832, %v1795
      %v1850 = vsel %vm1837, %v1833, %v1797
      %v1851 = vsel %vm1837, %v1834, %v1799
      %v1852 = vsel %vm1837, %v1835, %v1801
      %v1853 = vsel %vm1837, %v1836, %v1803
      %vm1854 = vcmask 424960
      %1855 = vst.msk [vmem:[%s496] sm:$0xff] %vm1854, %v1838
      %1856 = vst.msk [vmem:[%s496 + $0x8] sm:$0xff] %vm1854, %v1839
      %1857 = vst.msk [vmem:[%s496 + $0x10] sm:$0xff] %vm1854, %v1840
      %1858 = vst.msk [vmem:[%s496 + $0x18] sm:$0xff] %vm1854, %v1841
      %1859 = vst.msk [vmem:[%s496 + $0x20] sm:$0xff] %vm1854, %v1842
      %1860 = vst.msk [vmem:[%s496 + $0x28] sm:$0xff] %vm1854, %v1843
      %1861 = vst.msk [vmem:[%s496 + $0x30] sm:$0xff] %vm1854, %v1844
      %1862 = vst.msk [vmem:[%s496 + $0x38] sm:$0xff] %vm1854, %v1845
      %1863 = vst.msk [vmem:[%s496 + $0x40] sm:$0xff] %vm1854, %v1846
      %1864 = vst.msk [vmem:[%s496 + $0x48] sm:$0xff] %vm1854, %v1847
      %1865 = vst.msk [vmem:[%s496 + $0x50] sm:$0xff] %vm1854, %v1848
      %1866 = vst.msk [vmem:[%s496 + $0x58] sm:$0xff] %vm1854, %v1849
      %1867 = vst.msk [vmem:[%s496 + $0x60] sm:$0xff] %vm1854, %v1850
      %1868 = vst.msk [vmem:[%s496 + $0x68] sm:$0xff] %vm1854, %v1851
      %1869 = vst.msk [vmem:[%s496 + $0x70] sm:$0xff] %vm1854, %v1852
      %1870 = vst.msk [vmem:[%s496 + $0x78] sm:$0xff] %vm1854, %v1853
      %s1871 = smul.u32 16, %s26
      %p1872 = scmp.lt.s32.totalorder %s1871, 31
      %s1873 = scalar_select %p1872, %s1871, 31
      %s1874 = smul.addr %s1873, 8
      %s1875 = scalar_lea.vmem %s15, %s1874
      // Predicated region
      $region81: #{tpu_custom_call.1} parent=79 // pred_check
        %p1876 = pneg %p364
      $region82: #{tpu_custom_call.1} parent=79 // pred_check_branch
        %1878 = sbr.rel (%p1876) target = $region84
      $region83: #{tpu_custom_call.1} parent=79 // pred_region
        %s1879 = smul.u32 16, %s26
      $region84: #{tpu_custom_call.1} parent=79 // pred_fallthru
        _
    $region80: #{tpu_custom_call.1} parent=5 // pred_fallthru
      _
    %p1880 = scmp.le.s32.totalorder 2, %s21
    // Predicated region
    $region85: #{tpu_custom_call.1} parent=5 // pred_check
      %p1881 = pneg %p1880
    $region86: #{tpu_custom_call.1} parent=5 // pred_check_branch
      %1883 = sbr.rel (%p1881) target = $region88
    $region87: #{tpu_custom_call.1} parent=5 // pred_region
      %s1884 = ssub.s32 %s21, 2
      // Predicated region
      $region89: #{tpu_custom_call.1} parent=87 // pred_check
        %p1885 = pneg %p370
      $region90: #{tpu_custom_call.1} parent=87 // pred_check_branch
        %1887 = sbr.rel (%p1885) target = $region92
      $region91: #{tpu_custom_call.1} parent=87 // pred_region
        %s1888 = smul.u32 16, %s27
        %p1889 = scmp.lt.s32.totalorder %s1888, 31
        %s1890 = scalar_select %p1889, %s1888, 31
        %s1891 = smul.addr %s1890, 8
        %s1892 = scalar_lea.vmem %s15, %s1891
      $region92: #{tpu_custom_call.1} parent=87 // pred_fallthru
        _
    $region88: #{tpu_custom_call.1} parent=5 // pred_fallthru
      _
  $region6: #{tpu_custom_call.1} parent=0 // loop_footer
    %s25 = sadd.s32 1, %s21
  $region7: #{tpu_custom_call.1} parent=0 // loop_footer_branch
    %20 = sbr.rel target = $region3
  $region8: #{tpu_custom_call.1} parent=0 // loop_exit
    _

</llo_original>
